<compile_context>
chip_gen: v5e
topology: v5e:2x2
jax: 0.10.0
libtpu: 0.0.40
codegen_flags: <defaults>
</compile_context>

<pallas_src>
import functools

import jax
import jax.numpy as jnp
from jax import lax
from jax.experimental import pallas as pl
from jax.experimental.pallas import tpu as pltpu


MXU_BF16 = True   # bf16 MXU operands, f32 accumulate + f32 epilogue


# ------------------------------ fused kernel -------------------------------

def _fused_forward_kernel(xs_ref, w1k_ref, b1_ref, w2k_ref, b2_ref,
                          wl2_ref, bl_ref, live_ref, out_ref,
                          pm_ref, flat_ref, *, C1, C2, Ho, Wo, n_cls,
                          mxu_dtype):
    """One batch element per grid step; everything stays VMEM resident.

    Channel-major layout (channels on sublanes, flat spatial on lanes):
      xs_ref  : (1, 4, 8, 128)  parity-split padded input planes; plane
                r*2+s, padded channel c, lane p*Q+q == x_pad[b, c, 2p+r, 2q+s]
      w1k_ref : (C1, 72)   conv1 weight, K ordered (kh, kw, c_pad8)
      w2k_ref : (C2, 144)  conv2 weight, K ordered (kh, kw, c1)
      wl2_ref : (8, C2*128) linear weight; lane c*128 + p*Q + q holds
                wl[o, c, p, q]; dead lanes / pad rows are zero
      b1/b2   : (C1,1)/(C2,1); bl: (1, n_cls); live_ref: (1, SP) 0/1 mask
      out_ref : (1, 1, n_cls)
      pm_ref  : (C1, 128) f32 scratch - pooled map embedded at lane offset PADL
      flat_ref: (8, C2*128) f32 scratch - row 0 is the flattened conv2 output
    """
    P, Q = Ho + 1, Wo + 1
    SP = P * Q                      # flattened plane size on lanes
    PADL = Q + 1                    # zero margin for conv2's negative taps
    f32 = jnp.float32
    nn_dims = (((1,), (0,)), ((), ()))     # (M,K) @ (K,N)
    nt_dims = (((1,), (1,)), ((), ()))     # (M,K) @ (N,K)^T

    # ---- conv1 (3x3, pad 1) + bias + ReLU fused with the 2x2/2 max-pool ----
    # One K=72 MXU matmul per pooling parity; taps are contiguous lane slices
    # of the parity planes, stacked along the contraction (sublane) axis.
    pre = None
    for dh in range(2):
        for dw in range(2):
            taps = []
            for kh in range(3):
                for kw in range(3):
                    a, c = dh + kh, dw + kw
                    p4 = (a % 2) * 2 + (c % 2)
                    off = (a // 2) * Q + (c // 2)
                    taps.append(xs_ref[0, p4, :, off:off + SP])    # (8, SP)
            patch = jnp.concatenate(taps, axis=0).astype(mxu_dtype)  # (72,SP)
            acc = lax.dot_general(w1k_ref[...], patch, nn_dims,
                                  preferred_element_type=f32)       # (C1,SP)
            pre = acc if pre is None else jnp.maximum(pre, acc)
    # bias + ReLU commute with the max (monotone), apply once after pooling.
    pooled = jnp.maximum(pre + b1_ref[...], 0.0)                     # (C1,SP)

    # ---- conv2 (3x3, pad 1) + bias + ReLU on the pooled map ----
    # Pooled map sits at lane offset PADL of a 128-wide row; its own dead
    # lanes (p==Ho or q==Wo) are zeroed and only the borders of the scratch
    # are cleared, so every conv2 tap is a plain contiguous lane slice with
    # no per-tap masks and no tile-crossing relayout copies.
    pooled = pooled * live_ref[...]                                  # zero dead lanes
    pm_ref[:, 0:PADL] = jnp.zeros((C1, PADL), f32)
    pm_ref[:, PADL:PADL + SP] = pooled
    pm_ref[:, PADL + SP:] = jnp.zeros((C1, 128 - PADL - SP), f32)

    taps2 = []
    for kh in range(3):
        for kw in range(3):
            s = PADL + (kh - 1) * Q + (kw - 1)
            taps2.append(pm_ref[:, s:s + SP])                        # (C1,SP)
    patch2 = jnp.concatenate(taps2, axis=0).astype(mxu_dtype)        # (144,SP)
    acc2 = lax.dot_general(w2k_ref[...], patch2, nn_dims,
                           preferred_element_type=f32)               # (C2,SP)
    h2 = jnp.maximum(acc2 + b2_ref[...], 0.0)                        # (C2,SP)

    # ---- Flatten + Linear(C2*Ho*Wo, n_cls) on the MXU ----
    # Row 0 of flat_ref is the flattened activation (one 128-lane block per
    # channel); the linear weight is pre-permuted to the same layout so a
    # single NT matmul gives the logits.  Rows 1..7 are never written: they
    # only feed output rows that are discarded below.
    flat_ref[0:1, :] = jnp.zeros((1, flat_ref.shape[1]), f32)
    for c2 in range(C2):
        flat_ref[0:1, c2 * 128:c2 * 128 + SP] = h2[c2:c2 + 1, :]
    flat = flat_ref[...].astype(mxu_dtype)                           # (8, C2*128)
    y = lax.dot_general(flat, wl2_ref[...], nt_dims,
                        preferred_element_type=f32)                  # (8, 8)
    out_ref[0] = (y[0:1, 0:n_cls] + bl_ref[...]).astype(out_ref.dtype)


# ------------------------------ host wrapper -------------------------------

@jax.jit
def forward(x, params):
    """x: (B, 3, H, W) NCHW float32; params in PyTorch layouts."""
    w1, b1, w2, b2, wl, bl = params
    B, Cin, H, W = x.shape
    assert H % 2 == 0 and W % 2 == 0            # matches MaxPool2d floor mode
    C1, C2 = w1.shape[0], w2.shape[0]
    n_cls = wl.shape[0]
    Ho, Wo = H // 2, W // 2
    P, Q = Ho + 1, Wo + 1
    SP = P * Q
    PADL = Q + 1
    LIN_K = C2 * 128
    assert Cin <= 8 and C1 % 8 == 0 and C2 % 8 == 0 and n_cls <= 8
    assert SP + 2 * PADL <= 128                 # small-spatial fast path
    mxu_dtype = jnp.bfloat16 if MXU_BF16 else jnp.float32

    # Parity-split, zero-padded, channel-major input planes; channels padded
    # to one sublane tile (8) so the in-kernel K concatenation is tile-aligned.
    x_pad = jnp.pad(x, ((0, 0), (0, 0), (1, 1), (1, 1)))
    xs = (x_pad.reshape(B, Cin, P, 2, Q, 2)
          .transpose(0, 3, 5, 1, 2, 4)                       # (B, r, s, c, p, q)
          .reshape(B, 4, Cin, SP))
    xs = jnp.pad(xs, ((0, 0), (0, 0), (0, 8 - Cin), (0, 128 - SP)))

    # Conv weights with all 9 taps stacked along the contraction axis.
    w1k = (jnp.pad(w1, ((0, 0), (0, 8 - Cin), (0, 0), (0, 0)))
           .transpose(0, 2, 3, 1).reshape(C1, 9 * 8).astype(mxu_dtype))
    w2k = w2.transpose(0, 2, 3, 1).reshape(C2, 9 * C1).astype(mxu_dtype)

    # Linear weight permuted to the kernel's flatten layout (lane-dense,
    # contraction on lanes): lane c*128 + p*Q + q <- wl[o, c, p, q].
    wl2 = jnp.pad(wl.reshape(n_cls, C2, Ho, Wo),
                  ((0, 0), (0, 0), (0, 1), (0, 1)))          # (n, C2, P, Q)
    wl2 = jnp.pad(wl2.reshape(n_cls, C2, SP),
                  ((0, 8 - n_cls), (0, 0), (0, 128 - SP)))
    wl2 = wl2.reshape(8, LIN_K).astype(mxu_dtype)

    # 0/1 mask of "real" pooled lanes (p < Ho and q < Wo), built host-side.
    m = jnp.arange(SP)
    live = jnp.logical_and(m % Q < Wo, m // Q < Ho)
    live = live.astype(jnp.float32).reshape(1, SP)

    kernel = functools.partial(_fused_forward_kernel, C1=C1, C2=C2, Ho=Ho,
                               Wo=Wo, n_cls=n_cls, mxu_dtype=mxu_dtype)

    itemsize = 2 if MXU_BF16 else 4
    flops = B * (4 * 2 * C1 * 72 * SP + 2 * C2 * 9 * C1 * SP
                 + 2 * 8 * LIN_K * 8)
    bytes_accessed = (B * 4 * 8 * 128 * 4
                      + (C1 * 72 + C2 * 9 * C1 + 8 * LIN_K) * itemsize
                      + (C1 + C2 + n_cls + SP) * 4 + B * n_cls * 4)

    out = pl.pallas_call(
        kernel,
        grid=(B,),
        out_shape=jax.ShapeDtypeStruct((B, 1, n_cls), jnp.float32),
        in_specs=[
            pl.BlockSpec((1, 4, 8, 128), lambda b: (b, 0, 0, 0)),   # xs
            pl.BlockSpec((C1, 9 * 8), lambda b: (0, 0)),            # w1k
            pl.BlockSpec((C1, 1), lambda b: (0, 0)),                # b1
            pl.BlockSpec((C2, 9 * C1), lambda b: (0, 0)),           # w2k
            pl.BlockSpec((C2, 1), lambda b: (0, 0)),                # b2
            pl.BlockSpec((8, LIN_K), lambda b: (0, 0)),             # wl2
            pl.BlockSpec((1, n_cls), lambda b: (0, 0)),             # bl
            pl.BlockSpec((1, SP), lambda b: (0, 0)),                # live mask
        ],
        out_specs=pl.BlockSpec((1, 1, n_cls), lambda b: (b, 0, 0)),
        scratch_shapes=[
            pltpu.VMEM((C1, 128), jnp.float32),      # pooled map (padded row)
            pltpu.VMEM((8, LIN_K), jnp.float32),     # flattened activation
        ],
        compiler_params=pltpu.CompilerParams(
            dimension_semantics=("parallel",)),      # 2 TCs on v7x, free elsewhere
        cost_estimate=pl.CostEstimate(
            flops=flops, transcendentals=0, bytes_accessed=bytes_accessed),
    )(xs, w1k, b1.reshape(C1, 1), w2k, b2.reshape(C2, 1), wl2,
      bl.reshape(1, n_cls), live)
    return out.reshape(B, n_cls)


# ------------------------- pure-JAX reference check ------------------------

def reference_forward(x, params):
    w1, b1, w2, b2, wl, bl = params

    def conv_ref(x, w, b, relu):
        y = lax.conv_general_dilated(
            x, w, window_strides=(1, 1), padding=((1, 1), (1, 1)),
            dimension_numbers=('NCHW', 'OIHW', 'NCHW'))
        y = y + b.reshape(1, -1, 1, 1)
        return jnp.maximum(y, 0.0) if relu else y

    x = conv_ref(x, w1, b1, True)
    B, C, H, W = x.shape
    x = x.reshape(B, C, H // 2, 2, W // 2, 2).max(axis=(3, 5))
    x = conv_ref(x, w2, b2, True)
    x = x.reshape(x.shape[0], -1)
    return x @ wl.T + bl


# ----------------------------------- main -----------------------------------

if __name__ == "__main__":
    key = jax.random.PRNGKey(0)
    ks = jax.random.split(key, 7)

    B, H, W = 2, 16, 16
    x = jax.random.normal(ks[0], (B, 3, H, W), jnp.float32)

    # Deterministic synthetic parameters (shapes follow the module's builder).
    w1 = jax.random.normal(ks[1], (16, 3, 3, 3), jnp.float32) * 0.10
    b1 = jax.random.normal(ks[2], (16,), jnp.float32) * 0.10
    w2 = jax.random.normal(ks[3], (32, 16, 3, 3), jnp.float32) * 0.05
    b2 = jax.random.normal(ks[4], (32,), jnp.float32) * 0.05
    wl = jax.random.normal(ks[5], (5, 32 * (H // 2) * (W // 2)), jnp.float32) * 0.02
    bl = jax.random.normal(ks[6], (5,), jnp.float32) * 0.02
    params = (w1, b1, w2, b2, wl, bl)

    out = jax.block_until_ready(forward(x, params))
    ref = reference_forward(x, params)

    assert out.shape == (B, 5), out.shape
    # bf16 MXU operands (f32 accumulate) -> slightly looser tolerance.
    tol = 5e-3 if MXU_BF16 else 1e-3
    assert jnp.allclose(out, ref, atol=tol, rtol=tol), \
        float(jnp.max(jnp.abs(out - ref)))

    print("KERNEL_OK")
</pallas_src>

<mosaic_0001>
module attributes {stable_mosaic.version = 11 : i64} {
  func.func @_fused_forward_kernel(%arg0: i32, %arg1: memref<1x4x8x128xf32, #tpu.memory_space<vmem>>, %arg2: memref<16x72xbf16, #tpu.memory_space<vmem>>, %arg3: memref<16x1xf32, #tpu.memory_space<vmem>>, %arg4: memref<32x144xbf16, #tpu.memory_space<vmem>>, %arg5: memref<32x1xf32, #tpu.memory_space<vmem>>, %arg6: memref<8x4096xbf16, #tpu.memory_space<vmem>>, %arg7: memref<1x5xf32, #tpu.memory_space<vmem>>, %arg8: memref<1x81xf32, #tpu.memory_space<vmem>>, %arg9: memref<1x1x5xf32, #tpu.memory_space<vmem>>, %arg10: memref<16x128xf32, #tpu.memory_space<vmem>>, %arg11: memref<8x4096xf32, #tpu.memory_space<vmem>>) attributes {dimension_semantics = [#tpu.dimension_semantics<parallel>], iteration_bounds = array<i64: 2>, scalar_prefetch = 0 : i64, scratch_operands = 2 : i64, tpu.core_type = #tpu.core_type<tc>, window_params = [{transform_indices = @transform_0, window_bounds = array<i64: 1, 4, 8, 128>}, {pipeline_mode = #tpu.pipeline_mode<synchronous>, transform_indices = @transform_1, window_bounds = array<i64: 16, 72>}, {pipeline_mode = #tpu.pipeline_mode<synchronous>, transform_indices = @transform_2, window_bounds = array<i64: 16, 1>}, {pipeline_mode = #tpu.pipeline_mode<synchronous>, transform_indices = @transform_3, window_bounds = array<i64: 32, 144>}, {pipeline_mode = #tpu.pipeline_mode<synchronous>, transform_indices = @transform_4, window_bounds = array<i64: 32, 1>}, {pipeline_mode = #tpu.pipeline_mode<synchronous>, transform_indices = @transform_5, window_bounds = array<i64: 8, 4096>}, {pipeline_mode = #tpu.pipeline_mode<synchronous>, transform_indices = @transform_6, window_bounds = array<i64: 1, 5>}, {pipeline_mode = #tpu.pipeline_mode<synchronous>, transform_indices = @transform_7, window_bounds = array<i64: 1, 81>}, {transform_indices = @transform_8, window_bounds = array<i64: 1, 1, 5>}]} {
    %c0 = arith.constant 0 : index
    %c0_0 = arith.constant 0 : index
    %c0_1 = arith.constant 0 : index
    %c0_2 = arith.constant 0 : index
    %0 = vector.load %arg1[%c0, %c0_0, %c0_1, %c0_2] : memref<1x4x8x128xf32, #tpu.memory_space<vmem>>, vector<1x1x8x81xf32>
    %1 = vector.shape_cast %0 : vector<1x1x8x81xf32> to vector<8x81xf32>
    %c0_3 = arith.constant 0 : index
    %c1 = arith.constant 1 : index
    %c0_4 = arith.constant 0 : index
    %c0_5 = arith.constant 0 : index
    %2 = vector.load %arg1[%c0_3, %c1, %c0_4, %c0_5] : memref<1x4x8x128xf32, #tpu.memory_space<vmem>>, vector<1x1x8x81xf32>
    %3 = vector.shape_cast %2 : vector<1x1x8x81xf32> to vector<8x81xf32>
    %c0_6 = arith.constant 0 : index
    %c0_7 = arith.constant 0 : index
    %c0_8 = arith.constant 0 : index
    %c1_9 = arith.constant 1 : index
    %4 = vector.load %arg1[%c0_6, %c0_7, %c0_8, %c1_9] : memref<1x4x8x128xf32, #tpu.memory_space<vmem>>, vector<1x1x8x81xf32>
    %5 = vector.shape_cast %4 : vector<1x1x8x81xf32> to vector<8x81xf32>
    %c0_10 = arith.constant 0 : index
    %c2 = arith.constant 2 : index
    %c0_11 = arith.constant 0 : index
    %c0_12 = arith.constant 0 : index
    %6 = vector.load %arg1[%c0_10, %c2, %c0_11, %c0_12] : memref<1x4x8x128xf32, #tpu.memory_space<vmem>>, vector<1x1x8x81xf32>
    %7 = vector.shape_cast %6 : vector<1x1x8x81xf32> to vector<8x81xf32>
    %c0_13 = arith.constant 0 : index
    %c3 = arith.constant 3 : index
    %c0_14 = arith.constant 0 : index
    %c0_15 = arith.constant 0 : index
    %8 = vector.load %arg1[%c0_13, %c3, %c0_14, %c0_15] : memref<1x4x8x128xf32, #tpu.memory_space<vmem>>, vector<1x1x8x81xf32>
    %9 = vector.shape_cast %8 : vector<1x1x8x81xf32> to vector<8x81xf32>
    %c0_16 = arith.constant 0 : index
    %c2_17 = arith.constant 2 : index
    %c0_18 = arith.constant 0 : index
    %c1_19 = arith.constant 1 : index
    %10 = vector.load %arg1[%c0_16, %c2_17, %c0_18, %c1_19] : memref<1x4x8x128xf32, #tpu.memory_space<vmem>>, vector<1x1x8x81xf32>
    %11 = vector.shape_cast %10 : vector<1x1x8x81xf32> to vector<8x81xf32>
    %c0_20 = arith.constant 0 : index
    %c0_21 = arith.constant 0 : index
    %c0_22 = arith.constant 0 : index
    %c9 = arith.constant 9 : index
    %12 = vector.load %arg1[%c0_20, %c0_21, %c0_22, %c9] : memref<1x4x8x128xf32, #tpu.memory_space<vmem>>, vector<1x1x8x81xf32>
    %13 = vector.shape_cast %12 : vector<1x1x8x81xf32> to vector<8x81xf32>
    %c0_23 = arith.constant 0 : index
    %c1_24 = arith.constant 1 : index
    %c0_25 = arith.constant 0 : index
    %c9_26 = arith.constant 9 : index
    %14 = vector.load %arg1[%c0_23, %c1_24, %c0_25, %c9_26] : memref<1x4x8x128xf32, #tpu.memory_space<vmem>>, vector<1x1x8x81xf32>
    %15 = vector.shape_cast %14 : vector<1x1x8x81xf32> to vector<8x81xf32>
    %c0_27 = arith.constant 0 : index
    %c0_28 = arith.constant 0 : index
    %c0_29 = arith.constant 0 : index
    %c10 = arith.constant 10 : index
    %16 = vector.load %arg1[%c0_27, %c0_28, %c0_29, %c10] : memref<1x4x8x128xf32, #tpu.memory_space<vmem>>, vector<1x1x8x81xf32>
    %17 = vector.shape_cast %16 : vector<1x1x8x81xf32> to vector<8x81xf32>
    %18 = tpu.concatenate %1, %3, %5, %7, %9, %11, %13, %15, %17 in 0 : vector<8x81xf32>, vector<8x81xf32>, vector<8x81xf32>, vector<8x81xf32>, vector<8x81xf32>, vector<8x81xf32>, vector<8x81xf32>, vector<8x81xf32>, vector<8x81xf32> -> vector<72x81xf32>
    %19 = arith.truncf %18 : vector<72x81xf32> to vector<72x81xbf16>
    %c0_30 = arith.constant 0 : index
    %c0_31 = arith.constant 0 : index
    %20 = vector.load %arg2[%c0_30, %c0_31] : memref<16x72xbf16, #tpu.memory_space<vmem>>, vector<16x72xbf16>
    %cst = arith.constant dense<0.000000e+00> : vector<16x81xf32>
    %21 = tpu.matmul %20, %19, %cst {dimension_numbers = #tpu.dot_dimension_numbers<[1], [0], [0], [1], [0, 0, 1, 1], [], []>} : vector<16x72xbf16>, vector<72x81xbf16>, vector<16x81xf32> -> vector<16x81xf32>
    %c0_32 = arith.constant 0 : index
    %c1_33 = arith.constant 1 : index
    %c0_34 = arith.constant 0 : index
    %c0_35 = arith.constant 0 : index
    %22 = vector.load %arg1[%c0_32, %c1_33, %c0_34, %c0_35] : memref<1x4x8x128xf32, #tpu.memory_space<vmem>>, vector<1x1x8x81xf32>
    %23 = vector.shape_cast %22 : vector<1x1x8x81xf32> to vector<8x81xf32>
    %c0_36 = arith.constant 0 : index
    %c0_37 = arith.constant 0 : index
    %c0_38 = arith.constant 0 : index
    %c1_39 = arith.constant 1 : index
    %24 = vector.load %arg1[%c0_36, %c0_37, %c0_38, %c1_39] : memref<1x4x8x128xf32, #tpu.memory_space<vmem>>, vector<1x1x8x81xf32>
    %25 = vector.shape_cast %24 : vector<1x1x8x81xf32> to vector<8x81xf32>
    %c0_40 = arith.constant 0 : index
    %c1_41 = arith.constant 1 : index
    %c0_42 = arith.constant 0 : index
    %c1_43 = arith.constant 1 : index
    %26 = vector.load %arg1[%c0_40, %c1_41, %c0_42, %c1_43] : memref<1x4x8x128xf32, #tpu.memory_space<vmem>>, vector<1x1x8x81xf32>
    %27 = vector.shape_cast %26 : vector<1x1x8x81xf32> to vector<8x81xf32>
    %c0_44 = arith.constant 0 : index
    %c3_45 = arith.constant 3 : index
    %c0_46 = arith.constant 0 : index
    %c0_47 = arith.constant 0 : index
    %28 = vector.load %arg1[%c0_44, %c3_45, %c0_46, %c0_47] : memref<1x4x8x128xf32, #tpu.memory_space<vmem>>, vector<1x1x8x81xf32>
    %29 = vector.shape_cast %28 : vector<1x1x8x81xf32> to vector<8x81xf32>
    %c0_48 = arith.constant 0 : index
    %c2_49 = arith.constant 2 : index
    %c0_50 = arith.constant 0 : index
    %c1_51 = arith.constant 1 : index
    %30 = vector.load %arg1[%c0_48, %c2_49, %c0_50, %c1_51] : memref<1x4x8x128xf32, #tpu.memory_space<vmem>>, vector<1x1x8x81xf32>
    %31 = vector.shape_cast %30 : vector<1x1x8x81xf32> to vector<8x81xf32>
    %c0_52 = arith.constant 0 : index
    %c3_53 = arith.constant 3 : index
    %c0_54 = arith.constant 0 : index
    %c1_55 = arith.constant 1 : index
    %32 = vector.load %arg1[%c0_52, %c3_53, %c0_54, %c1_55] : memref<1x4x8x128xf32, #tpu.memory_space<vmem>>, vector<1x1x8x81xf32>
    %33 = vector.shape_cast %32 : vector<1x1x8x81xf32> to vector<8x81xf32>
    %c0_56 = arith.constant 0 : index
    %c1_57 = arith.constant 1 : index
    %c0_58 = arith.constant 0 : index
    %c9_59 = arith.constant 9 : index
    %34 = vector.load %arg1[%c0_56, %c1_57, %c0_58, %c9_59] : memref<1x4x8x128xf32, #tpu.memory_space<vmem>>, vector<1x1x8x81xf32>
    %35 = vector.shape_cast %34 : vector<1x1x8x81xf32> to vector<8x81xf32>
    %c0_60 = arith.constant 0 : index
    %c0_61 = arith.constant 0 : index
    %c0_62 = arith.constant 0 : index
    %c10_63 = arith.constant 10 : index
    %36 = vector.load %arg1[%c0_60, %c0_61, %c0_62, %c10_63] : memref<1x4x8x128xf32, #tpu.memory_space<vmem>>, vector<1x1x8x81xf32>
    %37 = vector.shape_cast %36 : vector<1x1x8x81xf32> to vector<8x81xf32>
    %c0_64 = arith.constant 0 : index
    %c1_65 = arith.constant 1 : index
    %c0_66 = arith.constant 0 : index
    %c10_67 = arith.constant 10 : index
    %38 = vector.load %arg1[%c0_64, %c1_65, %c0_66, %c10_67] : memref<1x4x8x128xf32, #tpu.memory_space<vmem>>, vector<1x1x8x81xf32>
    %39 = vector.shape_cast %38 : vector<1x1x8x81xf32> to vector<8x81xf32>
    %40 = tpu.concatenate %23, %25, %27, %29, %31, %33, %35, %37, %39 in 0 : vector<8x81xf32>, vector<8x81xf32>, vector<8x81xf32>, vector<8x81xf32>, vector<8x81xf32>, vector<8x81xf32>, vector<8x81xf32>, vector<8x81xf32>, vector<8x81xf32> -> vector<72x81xf32>
    %41 = arith.truncf %40 : vector<72x81xf32> to vector<72x81xbf16>
    %c0_68 = arith.constant 0 : index
    %c0_69 = arith.constant 0 : index
    %42 = vector.load %arg2[%c0_68, %c0_69] : memref<16x72xbf16, #tpu.memory_space<vmem>>, vector<16x72xbf16>
    %cst_70 = arith.constant dense<0.000000e+00> : vector<16x81xf32>
    %43 = tpu.matmul %42, %41, %cst_70 {dimension_numbers = #tpu.dot_dimension_numbers<[1], [0], [0], [1], [0, 0, 1, 1], [], []>} : vector<16x72xbf16>, vector<72x81xbf16>, vector<16x81xf32> -> vector<16x81xf32>
    %44 = arith.maximumf %21, %43 : vector<16x81xf32>
    %c0_71 = arith.constant 0 : index
    %c2_72 = arith.constant 2 : index
    %c0_73 = arith.constant 0 : index
    %c0_74 = arith.constant 0 : index
    %45 = vector.load %arg1[%c0_71, %c2_72, %c0_73, %c0_74] : memref<1x4x8x128xf32, #tpu.memory_space<vmem>>, vector<1x1x8x81xf32>
    %46 = vector.shape_cast %45 : vector<1x1x8x81xf32> to vector<8x81xf32>
    %c0_75 = arith.constant 0 : index
    %c3_76 = arith.constant 3 : index
    %c0_77 = arith.constant 0 : index
    %c0_78 = arith.constant 0 : index
    %47 = vector.load %arg1[%c0_75, %c3_76, %c0_77, %c0_78] : memref<1x4x8x128xf32, #tpu.memory_space<vmem>>, vector<1x1x8x81xf32>
    %48 = vector.shape_cast %47 : vector<1x1x8x81xf32> to vector<8x81xf32>
    %c0_79 = arith.constant 0 : index
    %c2_80 = arith.constant 2 : index
    %c0_81 = arith.constant 0 : index
    %c1_82 = arith.constant 1 : index
    %49 = vector.load %arg1[%c0_79, %c2_80, %c0_81, %c1_82] : memref<1x4x8x128xf32, #tpu.memory_space<vmem>>, vector<1x1x8x81xf32>
    %50 = vector.shape_cast %49 : vector<1x1x8x81xf32> to vector<8x81xf32>
    %c0_83 = arith.constant 0 : index
    %c0_84 = arith.constant 0 : index
    %c0_85 = arith.constant 0 : index
    %c9_86 = arith.constant 9 : index
    %51 = vector.load %arg1[%c0_83, %c0_84, %c0_85, %c9_86] : memref<1x4x8x128xf32, #tpu.memory_space<vmem>>, vector<1x1x8x81xf32>
    %52 = vector.shape_cast %51 : vector<1x1x8x81xf32> to vector<8x81xf32>
    %c0_87 = arith.constant 0 : index
    %c1_88 = arith.constant 1 : index
    %c0_89 = arith.constant 0 : index
    %c9_90 = arith.constant 9 : index
    %53 = vector.load %arg1[%c0_87, %c1_88, %c0_89, %c9_90] : memref<1x4x8x128xf32, #tpu.memory_space<vmem>>, vector<1x1x8x81xf32>
    %54 = vector.shape_cast %53 : vector<1x1x8x81xf32> to vector<8x81xf32>
    %c0_91 = arith.constant 0 : index
    %c0_92 = arith.constant 0 : index
    %c0_93 = arith.constant 0 : index
    %c10_94 = arith.constant 10 : index
    %55 = vector.load %arg1[%c0_91, %c0_92, %c0_93, %c10_94] : memref<1x4x8x128xf32, #tpu.memory_space<vmem>>, vector<1x1x8x81xf32>
    %56 = vector.shape_cast %55 : vector<1x1x8x81xf32> to vector<8x81xf32>
    %c0_95 = arith.constant 0 : index
    %c2_96 = arith.constant 2 : index
    %c0_97 = arith.constant 0 : index
    %c9_98 = arith.constant 9 : index
    %57 = vector.load %arg1[%c0_95, %c2_96, %c0_97, %c9_98] : memref<1x4x8x128xf32, #tpu.memory_space<vmem>>, vector<1x1x8x81xf32>
    %58 = vector.shape_cast %57 : vector<1x1x8x81xf32> to vector<8x81xf32>
    %c0_99 = arith.constant 0 : index
    %c3_100 = arith.constant 3 : index
    %c0_101 = arith.constant 0 : index
    %c9_102 = arith.constant 9 : index
    %59 = vector.load %arg1[%c0_99, %c3_100, %c0_101, %c9_102] : memref<1x4x8x128xf32, #tpu.memory_space<vmem>>, vector<1x1x8x81xf32>
    %60 = vector.shape_cast %59 : vector<1x1x8x81xf32> to vector<8x81xf32>
    %c0_103 = arith.constant 0 : index
    %c2_104 = arith.constant 2 : index
    %c0_105 = arith.constant 0 : index
    %c10_106 = arith.constant 10 : index
    %61 = vector.load %arg1[%c0_103, %c2_104, %c0_105, %c10_106] : memref<1x4x8x128xf32, #tpu.memory_space<vmem>>, vector<1x1x8x81xf32>
    %62 = vector.shape_cast %61 : vector<1x1x8x81xf32> to vector<8x81xf32>
    %63 = tpu.concatenate %46, %48, %50, %52, %54, %56, %58, %60, %62 in 0 : vector<8x81xf32>, vector<8x81xf32>, vector<8x81xf32>, vector<8x81xf32>, vector<8x81xf32>, vector<8x81xf32>, vector<8x81xf32>, vector<8x81xf32>, vector<8x81xf32> -> vector<72x81xf32>
    %64 = arith.truncf %63 : vector<72x81xf32> to vector<72x81xbf16>
    %c0_107 = arith.constant 0 : index
    %c0_108 = arith.constant 0 : index
    %65 = vector.load %arg2[%c0_107, %c0_108] : memref<16x72xbf16, #tpu.memory_space<vmem>>, vector<16x72xbf16>
    %cst_109 = arith.constant dense<0.000000e+00> : vector<16x81xf32>
    %66 = tpu.matmul %65, %64, %cst_109 {dimension_numbers = #tpu.dot_dimension_numbers<[1], [0], [0], [1], [0, 0, 1, 1], [], []>} : vector<16x72xbf16>, vector<72x81xbf16>, vector<16x81xf32> -> vector<16x81xf32>
    %67 = arith.maximumf %44, %66 : vector<16x81xf32>
    %c0_110 = arith.constant 0 : index
    %c3_111 = arith.constant 3 : index
    %c0_112 = arith.constant 0 : index
    %c0_113 = arith.constant 0 : index
    %68 = vector.load %arg1[%c0_110, %c3_111, %c0_112, %c0_113] : memref<1x4x8x128xf32, #tpu.memory_space<vmem>>, vector<1x1x8x81xf32>
    %69 = vector.shape_cast %68 : vector<1x1x8x81xf32> to vector<8x81xf32>
    %c0_114 = arith.constant 0 : index
    %c2_115 = arith.constant 2 : index
    %c0_116 = arith.constant 0 : index
    %c1_117 = arith.constant 1 : index
    %70 = vector.load %arg1[%c0_114, %c2_115, %c0_116, %c1_117] : memref<1x4x8x128xf32, #tpu.memory_space<vmem>>, vector<1x1x8x81xf32>
    %71 = vector.shape_cast %70 : vector<1x1x8x81xf32> to vector<8x81xf32>
    %c0_118 = arith.constant 0 : index
    %c3_119 = arith.constant 3 : index
    %c0_120 = arith.constant 0 : index
    %c1_121 = arith.constant 1 : index
    %72 = vector.load %arg1[%c0_118, %c3_119, %c0_120, %c1_121] : memref<1x4x8x128xf32, #tpu.memory_space<vmem>>, vector<1x1x8x81xf32>
    %73 = vector.shape_cast %72 : vector<1x1x8x81xf32> to vector<8x81xf32>
    %c0_122 = arith.constant 0 : index
    %c1_123 = arith.constant 1 : index
    %c0_124 = arith.constant 0 : index
    %c9_125 = arith.constant 9 : index
    %74 = vector.load %arg1[%c0_122, %c1_123, %c0_124, %c9_125] : memref<1x4x8x128xf32, #tpu.memory_space<vmem>>, vector<1x1x8x81xf32>
    %75 = vector.shape_cast %74 : vector<1x1x8x81xf32> to vector<8x81xf32>
    %c0_126 = arith.constant 0 : index
    %c0_127 = arith.constant 0 : index
    %c0_128 = arith.constant 0 : index
    %c10_129 = arith.constant 10 : index
    %76 = vector.load %arg1[%c0_126, %c0_127, %c0_128, %c10_129] : memref<1x4x8x128xf32, #tpu.memory_space<vmem>>, vector<1x1x8x81xf32>
    %77 = vector.shape_cast %76 : vector<1x1x8x81xf32> to vector<8x81xf32>
    %c0_130 = arith.constant 0 : index
    %c1_131 = arith.constant 1 : index
    %c0_132 = arith.constant 0 : index
    %c10_133 = arith.constant 10 : index
    %78 = vector.load %arg1[%c0_130, %c1_131, %c0_132, %c10_133] : memref<1x4x8x128xf32, #tpu.memory_space<vmem>>, vector<1x1x8x81xf32>
    %79 = vector.shape_cast %78 : vector<1x1x8x81xf32> to vector<8x81xf32>
    %c0_134 = arith.constant 0 : index
    %c3_135 = arith.constant 3 : index
    %c0_136 = arith.constant 0 : index
    %c9_137 = arith.constant 9 : index
    %80 = vector.load %arg1[%c0_134, %c3_135, %c0_136, %c9_137] : memref<1x4x8x128xf32, #tpu.memory_space<vmem>>, vector<1x1x8x81xf32>
    %81 = vector.shape_cast %80 : vector<1x1x8x81xf32> to vector<8x81xf32>
    %c0_138 = arith.constant 0 : index
    %c2_139 = arith.constant 2 : index
    %c0_140 = arith.constant 0 : index
    %c10_141 = arith.constant 10 : index
    %82 = vector.load %arg1[%c0_138, %c2_139, %c0_140, %c10_141] : memref<1x4x8x128xf32, #tpu.memory_space<vmem>>, vector<1x1x8x81xf32>
    %83 = vector.shape_cast %82 : vector<1x1x8x81xf32> to vector<8x81xf32>
    %c0_142 = arith.constant 0 : index
    %c3_143 = arith.constant 3 : index
    %c0_144 = arith.constant 0 : index
    %c10_145 = arith.constant 10 : index
    %84 = vector.load %arg1[%c0_142, %c3_143, %c0_144, %c10_145] : memref<1x4x8x128xf32, #tpu.memory_space<vmem>>, vector<1x1x8x81xf32>
    %85 = vector.shape_cast %84 : vector<1x1x8x81xf32> to vector<8x81xf32>
    %86 = tpu.concatenate %69, %71, %73, %75, %77, %79, %81, %83, %85 in 0 : vector<8x81xf32>, vector<8x81xf32>, vector<8x81xf32>, vector<8x81xf32>, vector<8x81xf32>, vector<8x81xf32>, vector<8x81xf32>, vector<8x81xf32>, vector<8x81xf32> -> vector<72x81xf32>
    %87 = arith.truncf %86 : vector<72x81xf32> to vector<72x81xbf16>
    %c0_146 = arith.constant 0 : index
    %c0_147 = arith.constant 0 : index
    %88 = vector.load %arg2[%c0_146, %c0_147] : memref<16x72xbf16, #tpu.memory_space<vmem>>, vector<16x72xbf16>
    %cst_148 = arith.constant dense<0.000000e+00> : vector<16x81xf32>
    %89 = tpu.matmul %88, %87, %cst_148 {dimension_numbers = #tpu.dot_dimension_numbers<[1], [0], [0], [1], [0, 0, 1, 1], [], []>} : vector<16x72xbf16>, vector<72x81xbf16>, vector<16x81xf32> -> vector<16x81xf32>
    %90 = arith.maximumf %67, %89 : vector<16x81xf32>
    %c0_149 = arith.constant 0 : index
    %c0_150 = arith.constant 0 : index
    %91 = vector.load %arg3[%c0_149, %c0_150] : memref<16x1xf32, #tpu.memory_space<vmem>>, vector<16x1xf32>
    %92 = vector.broadcast %91 : vector<16x1xf32> to vector<16x81xf32>
    %93 = arith.addf %90, %92 : vector<16x81xf32>
    %cst_151 = arith.constant 0.000000e+00 : f32
    %94 = vector.broadcast %cst_151 : f32 to vector<16x81xf32>
    %95 = arith.maximumf %93, %94 : vector<16x81xf32>
    %c0_152 = arith.constant 0 : index
    %c0_153 = arith.constant 0 : index
    %96 = vector.load %arg8[%c0_152, %c0_153] : memref<1x81xf32, #tpu.memory_space<vmem>>, vector<1x81xf32>
    %97 = vector.broadcast %96 : vector<1x81xf32> to vector<16x81xf32>
    %98 = arith.mulf %95, %97 : vector<16x81xf32>
    %cst_154 = arith.constant 0.000000e+00 : f32
    %99 = vector.broadcast %cst_154 : f32 to vector<16x10xf32>
    %c0_155 = arith.constant 0 : index
    %c0_156 = arith.constant 0 : index
    %100 = vector.load %arg10[%c0_155, %c0_156] : memref<16x128xf32, #tpu.memory_space<vmem>>, vector<16x10xf32>
    tpu.vector_store %arg10[%c0_155, %c0_156], %99 {strides = array<i32>} : memref<16x128xf32, #tpu.memory_space<vmem>>, vector<16x10xf32>,
    %c0_157 = arith.constant 0 : index
    %c10_158 = arith.constant 10 : index
    %101 = vector.load %arg10[%c0_157, %c10_158] : memref<16x128xf32, #tpu.memory_space<vmem>>, vector<16x81xf32>
    tpu.vector_store %arg10[%c0_157, %c10_158], %98 {strides = array<i32>} : memref<16x128xf32, #tpu.memory_space<vmem>>, vector<16x81xf32>,
    %cst_159 = arith.constant 0.000000e+00 : f32
    %102 = vector.broadcast %cst_159 : f32 to vector<16x37xf32>
    %c0_160 = arith.constant 0 : index
    %c91 = arith.constant 91 : index
    %103 = vector.load %arg10[%c0_160, %c91] : memref<16x128xf32, #tpu.memory_space<vmem>>, vector<16x37xf32>
    tpu.vector_store %arg10[%c0_160, %c91], %102 {strides = array<i32>} : memref<16x128xf32, #tpu.memory_space<vmem>>, vector<16x37xf32>,
    %c0_161 = arith.constant 0 : index
    %c0_162 = arith.constant 0 : index
    %104 = vector.load %arg10[%c0_161, %c0_162] : memref<16x128xf32, #tpu.memory_space<vmem>>, vector<16x81xf32>
    %c0_163 = arith.constant 0 : index
    %c1_164 = arith.constant 1 : index
    %105 = vector.load %arg10[%c0_163, %c1_164] : memref<16x128xf32, #tpu.memory_space<vmem>>, vector<16x81xf32>
    %c0_165 = arith.constant 0 : index
    %c2_166 = arith.constant 2 : index
    %106 = vector.load %arg10[%c0_165, %c2_166] : memref<16x128xf32, #tpu.memory_space<vmem>>, vector<16x81xf32>
    %c0_167 = arith.constant 0 : index
    %c9_168 = arith.constant 9 : index
    %107 = vector.load %arg10[%c0_167, %c9_168] : memref<16x128xf32, #tpu.memory_space<vmem>>, vector<16x81xf32>
    %c0_169 = arith.constant 0 : index
    %c10_170 = arith.constant 10 : index
    %108 = vector.load %arg10[%c0_169, %c10_170] : memref<16x128xf32, #tpu.memory_space<vmem>>, vector<16x81xf32>
    %c0_171 = arith.constant 0 : index
    %c11 = arith.constant 11 : index
    %109 = vector.load %arg10[%c0_171, %c11] : memref<16x128xf32, #tpu.memory_space<vmem>>, vector<16x81xf32>
    %c0_172 = arith.constant 0 : index
    %c18 = arith.constant 18 : index
    %110 = vector.load %arg10[%c0_172, %c18] : memref<16x128xf32, #tpu.memory_space<vmem>>, vector<16x81xf32>
    %c0_173 = arith.constant 0 : index
    %c19 = arith.constant 19 : index
    %111 = vector.load %arg10[%c0_173, %c19] : memref<16x128xf32, #tpu.memory_space<vmem>>, vector<16x81xf32>
    %c0_174 = arith.constant 0 : index
    %c20 = arith.constant 20 : index
    %112 = vector.load %arg10[%c0_174, %c20] : memref<16x128xf32, #tpu.memory_space<vmem>>, vector<16x81xf32>
    %113 = tpu.concatenate %104, %105, %106, %107, %108, %109, %110, %111, %112 in 0 : vector<16x81xf32>, vector<16x81xf32>, vector<16x81xf32>, vector<16x81xf32>, vector<16x81xf32>, vector<16x81xf32>, vector<16x81xf32>, vector<16x81xf32>, vector<16x81xf32> -> vector<144x81xf32>
    %114 = arith.truncf %113 : vector<144x81xf32> to vector<144x81xbf16>
    %c0_175 = arith.constant 0 : index
    %c0_176 = arith.constant 0 : index
    %115 = vector.load %arg4[%c0_175, %c0_176] : memref<32x144xbf16, #tpu.memory_space<vmem>>, vector<32x144xbf16>
    %cst_177 = arith.constant dense<0.000000e+00> : vector<32x81xf32>
    %116 = tpu.matmul %115, %114, %cst_177 {dimension_numbers = #tpu.dot_dimension_numbers<[1], [0], [0], [1], [0, 0, 1, 1], [], []>} : vector<32x144xbf16>, vector<144x81xbf16>, vector<32x81xf32> -> vector<32x81xf32>
    %c0_178 = arith.constant 0 : index
    %c0_179 = arith.constant 0 : index
    %117 = vector.load %arg5[%c0_178, %c0_179] : memref<32x1xf32, #tpu.memory_space<vmem>>, vector<32x1xf32>
    %118 = vector.broadcast %117 : vector<32x1xf32> to vector<32x81xf32>
    %119 = arith.addf %116, %118 : vector<32x81xf32>
    %cst_180 = arith.constant 0.000000e+00 : f32
    %120 = vector.broadcast %cst_180 : f32 to vector<32x81xf32>
    %121 = arith.maximumf %119, %120 : vector<32x81xf32>
    %cst_181 = arith.constant 0.000000e+00 : f32
    %122 = vector.broadcast %cst_181 : f32 to vector<1x4096xf32>
    %c0_182 = arith.constant 0 : index
    %c0_183 = arith.constant 0 : index
    %123 = vector.load %arg11[%c0_182, %c0_183] : memref<8x4096xf32, #tpu.memory_space<vmem>>, vector<1x4096xf32>
    tpu.vector_store %arg11[%c0_182, %c0_183], %122 {strides = array<i32>} : memref<8x4096xf32, #tpu.memory_space<vmem>>, vector<1x4096xf32>,
    %124 = vector.extract_strided_slice %121 {offsets = [0, 0], sizes = [1, 81], strides = [1, 1]} : vector<32x81xf32> to vector<1x81xf32>
    %c0_184 = arith.constant 0 : index
    %c0_185 = arith.constant 0 : index
    %125 = vector.load %arg11[%c0_184, %c0_185] : memref<8x4096xf32, #tpu.memory_space<vmem>>, vector<1x81xf32>
    tpu.vector_store %arg11[%c0_184, %c0_185], %124 {strides = array<i32>} : memref<8x4096xf32, #tpu.memory_space<vmem>>, vector<1x81xf32>,
    %126 = vector.extract_strided_slice %121 {offsets = [1, 0], sizes = [1, 81], strides = [1, 1]} : vector<32x81xf32> to vector<1x81xf32>
    %c0_186 = arith.constant 0 : index
    %c128 = arith.constant 128 : index
    %127 = vector.load %arg11[%c0_186, %c128] : memref<8x4096xf32, #tpu.memory_space<vmem>>, vector<1x81xf32>
    tpu.vector_store %arg11[%c0_186, %c128], %126 {strides = array<i32>} : memref<8x4096xf32, #tpu.memory_space<vmem>>, vector<1x81xf32>,
    %128 = vector.extract_strided_slice %121 {offsets = [2, 0], sizes = [1, 81], strides = [1, 1]} : vector<32x81xf32> to vector<1x81xf32>
    %c0_187 = arith.constant 0 : index
    %c256 = arith.constant 256 : index
    %129 = vector.load %arg11[%c0_187, %c256] : memref<8x4096xf32, #tpu.memory_space<vmem>>, vector<1x81xf32>
    tpu.vector_store %arg11[%c0_187, %c256], %128 {strides = array<i32>} : memref<8x4096xf32, #tpu.memory_space<vmem>>, vector<1x81xf32>,
    %130 = vector.extract_strided_slice %121 {offsets = [3, 0], sizes = [1, 81], strides = [1, 1]} : vector<32x81xf32> to vector<1x81xf32>
    %c0_188 = arith.constant 0 : index
    %c384 = arith.constant 384 : index
    %131 = vector.load %arg11[%c0_188, %c384] : memref<8x4096xf32, #tpu.memory_space<vmem>>, vector<1x81xf32>
    tpu.vector_store %arg11[%c0_188, %c384], %130 {strides = array<i32>} : memref<8x4096xf32, #tpu.memory_space<vmem>>, vector<1x81xf32>,
    %132 = vector.extract_strided_slice %121 {offsets = [4, 0], sizes = [1, 81], strides = [1, 1]} : vector<32x81xf32> to vector<1x81xf32>
    %c0_189 = arith.constant 0 : index
    %c512 = arith.constant 512 : index
    %133 = vector.load %arg11[%c0_189, %c512] : memref<8x4096xf32, #tpu.memory_space<vmem>>, vector<1x81xf32>
    tpu.vector_store %arg11[%c0_189, %c512], %132 {strides = array<i32>} : memref<8x4096xf32, #tpu.memory_space<vmem>>, vector<1x81xf32>,
    %134 = vector.extract_strided_slice %121 {offsets = [5, 0], sizes = [1, 81], strides = [1, 1]} : vector<32x81xf32> to vector<1x81xf32>
    %c0_190 = arith.constant 0 : index
    %c640 = arith.constant 640 : index
    %135 = vector.load %arg11[%c0_190, %c640] : memref<8x4096xf32, #tpu.memory_space<vmem>>, vector<1x81xf32>
    tpu.vector_store %arg11[%c0_190, %c640], %134 {strides = array<i32>} : memref<8x4096xf32, #tpu.memory_space<vmem>>, vector<1x81xf32>,
    %136 = vector.extract_strided_slice %121 {offsets = [6, 0], sizes = [1, 81], strides = [1, 1]} : vector<32x81xf32> to vector<1x81xf32>
    %c0_191 = arith.constant 0 : index
    %c768 = arith.constant 768 : index
    %137 = vector.load %arg11[%c0_191, %c768] : memref<8x4096xf32, #tpu.memory_space<vmem>>, vector<1x81xf32>
    tpu.vector_store %arg11[%c0_191, %c768], %136 {strides = array<i32>} : memref<8x4096xf32, #tpu.memory_space<vmem>>, vector<1x81xf32>,
    %138 = vector.extract_strided_slice %121 {offsets = [7, 0], sizes = [1, 81], strides = [1, 1]} : vector<32x81xf32> to vector<1x81xf32>
    %c0_192 = arith.constant 0 : index
    %c896 = arith.constant 896 : index
    %139 = vector.load %arg11[%c0_192, %c896] : memref<8x4096xf32, #tpu.memory_space<vmem>>, vector<1x81xf32>
    tpu.vector_store %arg11[%c0_192, %c896], %138 {strides = array<i32>} : memref<8x4096xf32, #tpu.memory_space<vmem>>, vector<1x81xf32>,
    %140 = vector.extract_strided_slice %121 {offsets = [8, 0], sizes = [1, 81], strides = [1, 1]} : vector<32x81xf32> to vector<1x81xf32>
    %c0_193 = arith.constant 0 : index
    %c1024 = arith.constant 1024 : index
    %141 = vector.load %arg11[%c0_193, %c1024] : memref<8x4096xf32, #tpu.memory_space<vmem>>, vector<1x81xf32>
    tpu.vector_store %arg11[%c0_193, %c1024], %140 {strides = array<i32>} : memref<8x4096xf32, #tpu.memory_space<vmem>>, vector<1x81xf32>,
    %142 = vector.extract_strided_slice %121 {offsets = [9, 0], sizes = [1, 81], strides = [1, 1]} : vector<32x81xf32> to vector<1x81xf32>
    %c0_194 = arith.constant 0 : index
    %c1152 = arith.constant 1152 : index
    %143 = vector.load %arg11[%c0_194, %c1152] : memref<8x4096xf32, #tpu.memory_space<vmem>>, vector<1x81xf32>
    tpu.vector_store %arg11[%c0_194, %c1152], %142 {strides = array<i32>} : memref<8x4096xf32, #tpu.memory_space<vmem>>, vector<1x81xf32>,
    %144 = vector.extract_strided_slice %121 {offsets = [10, 0], sizes = [1, 81], strides = [1, 1]} : vector<32x81xf32> to vector<1x81xf32>
    %c0_195 = arith.constant 0 : index
    %c1280 = arith.constant 1280 : index
    %145 = vector.load %arg11[%c0_195, %c1280] : memref<8x4096xf32, #tpu.memory_space<vmem>>, vector<1x81xf32>
    tpu.vector_store %arg11[%c0_195, %c1280], %144 {strides = array<i32>} : memref<8x4096xf32, #tpu.memory_space<vmem>>, vector<1x81xf32>,
    %146 = vector.extract_strided_slice %121 {offsets = [11, 0], sizes = [1, 81], strides = [1, 1]} : vector<32x81xf32> to vector<1x81xf32>
    %c0_196 = arith.constant 0 : index
    %c1408 = arith.constant 1408 : index
    %147 = vector.load %arg11[%c0_196, %c1408] : memref<8x4096xf32, #tpu.memory_space<vmem>>, vector<1x81xf32>
    tpu.vector_store %arg11[%c0_196, %c1408], %146 {strides = array<i32>} : memref<8x4096xf32, #tpu.memory_space<vmem>>, vector<1x81xf32>,
    %148 = vector.extract_strided_slice %121 {offsets = [12, 0], sizes = [1, 81], strides = [1, 1]} : vector<32x81xf32> to vector<1x81xf32>
    %c0_197 = arith.constant 0 : index
    %c1536 = arith.constant 1536 : index
    %149 = vector.load %arg11[%c0_197, %c1536] : memref<8x4096xf32, #tpu.memory_space<vmem>>, vector<1x81xf32>
    tpu.vector_store %arg11[%c0_197, %c1536], %148 {strides = array<i32>} : memref<8x4096xf32, #tpu.memory_space<vmem>>, vector<1x81xf32>,
    %150 = vector.extract_strided_slice %121 {offsets = [13, 0], sizes = [1, 81], strides = [1, 1]} : vector<32x81xf32> to vector<1x81xf32>
    %c0_198 = arith.constant 0 : index
    %c1664 = arith.constant 1664 : index
    %151 = vector.load %arg11[%c0_198, %c1664] : memref<8x4096xf32, #tpu.memory_space<vmem>>, vector<1x81xf32>
    tpu.vector_store %arg11[%c0_198, %c1664], %150 {strides = array<i32>} : memref<8x4096xf32, #tpu.memory_space<vmem>>, vector<1x81xf32>,
    %152 = vector.extract_strided_slice %121 {offsets = [14, 0], sizes = [1, 81], strides = [1, 1]} : vector<32x81xf32> to vector<1x81xf32>
    %c0_199 = arith.constant 0 : index
    %c1792 = arith.constant 1792 : index
    %153 = vector.load %arg11[%c0_199, %c1792] : memref<8x4096xf32, #tpu.memory_space<vmem>>, vector<1x81xf32>
    tpu.vector_store %arg11[%c0_199, %c1792], %152 {strides = array<i32>} : memref<8x4096xf32, #tpu.memory_space<vmem>>, vector<1x81xf32>,
    %154 = vector.extract_strided_slice %121 {offsets = [15, 0], sizes = [1, 81], strides = [1, 1]} : vector<32x81xf32> to vector<1x81xf32>
    %c0_200 = arith.constant 0 : index
    %c1920 = arith.constant 1920 : index
    %155 = vector.load %arg11[%c0_200, %c1920] : memref<8x4096xf32, #tpu.memory_space<vmem>>, vector<1x81xf32>
    tpu.vector_store %arg11[%c0_200, %c1920], %154 {strides = array<i32>} : memref<8x4096xf32, #tpu.memory_space<vmem>>, vector<1x81xf32>,
    %156 = vector.extract_strided_slice %121 {offsets = [16, 0], sizes = [1, 81], strides = [1, 1]} : vector<32x81xf32> to vector<1x81xf32>
    %c0_201 = arith.constant 0 : index
    %c2048 = arith.constant 2048 : index
    %157 = vector.load %arg11[%c0_201, %c2048] : memref<8x4096xf32, #tpu.memory_space<vmem>>, vector<1x81xf32>
    tpu.vector_store %arg11[%c0_201, %c2048], %156 {strides = array<i32>} : memref<8x4096xf32, #tpu.memory_space<vmem>>, vector<1x81xf32>,
    %158 = vector.extract_strided_slice %121 {offsets = [17, 0], sizes = [1, 81], strides = [1, 1]} : vector<32x81xf32> to vector<1x81xf32>
    %c0_202 = arith.constant 0 : index
    %c2176 = arith.constant 2176 : index
    %159 = vector.load %arg11[%c0_202, %c2176] : memref<8x4096xf32, #tpu.memory_space<vmem>>, vector<1x81xf32>
    tpu.vector_store %arg11[%c0_202, %c2176], %158 {strides = array<i32>} : memref<8x4096xf32, #tpu.memory_space<vmem>>, vector<1x81xf32>,
    %160 = vector.extract_strided_slice %121 {offsets = [18, 0], sizes = [1, 81], strides = [1, 1]} : vector<32x81xf32> to vector<1x81xf32>
    %c0_203 = arith.constant 0 : index
    %c2304 = arith.constant 2304 : index
    %161 = vector.load %arg11[%c0_203, %c2304] : memref<8x4096xf32, #tpu.memory_space<vmem>>, vector<1x81xf32>
    tpu.vector_store %arg11[%c0_203, %c2304], %160 {strides = array<i32>} : memref<8x4096xf32, #tpu.memory_space<vmem>>, vector<1x81xf32>,
    %162 = vector.extract_strided_slice %121 {offsets = [19, 0], sizes = [1, 81], strides = [1, 1]} : vector<32x81xf32> to vector<1x81xf32>
    %c0_204 = arith.constant 0 : index
    %c2432 = arith.constant 2432 : index
    %163 = vector.load %arg11[%c0_204, %c2432] : memref<8x4096xf32, #tpu.memory_space<vmem>>, vector<1x81xf32>
    tpu.vector_store %arg11[%c0_204, %c2432], %162 {strides = array<i32>} : memref<8x4096xf32, #tpu.memory_space<vmem>>, vector<1x81xf32>,
    %164 = vector.extract_strided_slice %121 {offsets = [20, 0], sizes = [1, 81], strides = [1, 1]} : vector<32x81xf32> to vector<1x81xf32>
    %c0_205 = arith.constant 0 : index
    %c2560 = arith.constant 2560 : index
    %165 = vector.load %arg11[%c0_205, %c2560] : memref<8x4096xf32, #tpu.memory_space<vmem>>, vector<1x81xf32>
    tpu.vector_store %arg11[%c0_205, %c2560], %164 {strides = array<i32>} : memref<8x4096xf32, #tpu.memory_space<vmem>>, vector<1x81xf32>,
    %166 = vector.extract_strided_slice %121 {offsets = [21, 0], sizes = [1, 81], strides = [1, 1]} : vector<32x81xf32> to vector<1x81xf32>
    %c0_206 = arith.constant 0 : index
    %c2688 = arith.constant 2688 : index
    %167 = vector.load %arg11[%c0_206, %c2688] : memref<8x4096xf32, #tpu.memory_space<vmem>>, vector<1x81xf32>
    tpu.vector_store %arg11[%c0_206, %c2688], %166 {strides = array<i32>} : memref<8x4096xf32, #tpu.memory_space<vmem>>, vector<1x81xf32>,
    %168 = vector.extract_strided_slice %121 {offsets = [22, 0], sizes = [1, 81], strides = [1, 1]} : vector<32x81xf32> to vector<1x81xf32>
    %c0_207 = arith.constant 0 : index
    %c2816 = arith.constant 2816 : index
    %169 = vector.load %arg11[%c0_207, %c2816] : memref<8x4096xf32, #tpu.memory_space<vmem>>, vector<1x81xf32>
    tpu.vector_store %arg11[%c0_207, %c2816], %168 {strides = array<i32>} : memref<8x4096xf32, #tpu.memory_space<vmem>>, vector<1x81xf32>,
    %170 = vector.extract_strided_slice %121 {offsets = [23, 0], sizes = [1, 81], strides = [1, 1]} : vector<32x81xf32> to vector<1x81xf32>
    %c0_208 = arith.constant 0 : index
    %c2944 = arith.constant 2944 : index
    %171 = vector.load %arg11[%c0_208, %c2944] : memref<8x4096xf32, #tpu.memory_space<vmem>>, vector<1x81xf32>
    tpu.vector_store %arg11[%c0_208, %c2944], %170 {strides = array<i32>} : memref<8x4096xf32, #tpu.memory_space<vmem>>, vector<1x81xf32>,
    %172 = vector.extract_strided_slice %121 {offsets = [24, 0], sizes = [1, 81], strides = [1, 1]} : vector<32x81xf32> to vector<1x81xf32>
    %c0_209 = arith.constant 0 : index
    %c3072 = arith.constant 3072 : index
    %173 = vector.load %arg11[%c0_209, %c3072] : memref<8x4096xf32, #tpu.memory_space<vmem>>, vector<1x81xf32>
    tpu.vector_store %arg11[%c0_209, %c3072], %172 {strides = array<i32>} : memref<8x4096xf32, #tpu.memory_space<vmem>>, vector<1x81xf32>,
    %174 = vector.extract_strided_slice %121 {offsets = [25, 0], sizes = [1, 81], strides = [1, 1]} : vector<32x81xf32> to vector<1x81xf32>
    %c0_210 = arith.constant 0 : index
    %c3200 = arith.constant 3200 : index
    %175 = vector.load %arg11[%c0_210, %c3200] : memref<8x4096xf32, #tpu.memory_space<vmem>>, vector<1x81xf32>
    tpu.vector_store %arg11[%c0_210, %c3200], %174 {strides = array<i32>} : memref<8x4096xf32, #tpu.memory_space<vmem>>, vector<1x81xf32>,
    %176 = vector.extract_strided_slice %121 {offsets = [26, 0], sizes = [1, 81], strides = [1, 1]} : vector<32x81xf32> to vector<1x81xf32>
    %c0_211 = arith.constant 0 : index
    %c3328 = arith.constant 3328 : index
    %177 = vector.load %arg11[%c0_211, %c3328] : memref<8x4096xf32, #tpu.memory_space<vmem>>, vector<1x81xf32>
    tpu.vector_store %arg11[%c0_211, %c3328], %176 {strides = array<i32>} : memref<8x4096xf32, #tpu.memory_space<vmem>>, vector<1x81xf32>,
    %178 = vector.extract_strided_slice %121 {offsets = [27, 0], sizes = [1, 81], strides = [1, 1]} : vector<32x81xf32> to vector<1x81xf32>
    %c0_212 = arith.constant 0 : index
    %c3456 = arith.constant 3456 : index
    %179 = vector.load %arg11[%c0_212, %c3456] : memref<8x4096xf32, #tpu.memory_space<vmem>>, vector<1x81xf32>
    tpu.vector_store %arg11[%c0_212, %c3456], %178 {strides = array<i32>} : memref<8x4096xf32, #tpu.memory_space<vmem>>, vector<1x81xf32>,
    %180 = vector.extract_strided_slice %121 {offsets = [28, 0], sizes = [1, 81], strides = [1, 1]} : vector<32x81xf32> to vector<1x81xf32>
    %c0_213 = arith.constant 0 : index
    %c3584 = arith.constant 3584 : index
    %181 = vector.load %arg11[%c0_213, %c3584] : memref<8x4096xf32, #tpu.memory_space<vmem>>, vector<1x81xf32>
    tpu.vector_store %arg11[%c0_213, %c3584], %180 {strides = array<i32>} : memref<8x4096xf32, #tpu.memory_space<vmem>>, vector<1x81xf32>,
    %182 = vector.extract_strided_slice %121 {offsets = [29, 0], sizes = [1, 81], strides = [1, 1]} : vector<32x81xf32> to vector<1x81xf32>
    %c0_214 = arith.constant 0 : index
    %c3712 = arith.constant 3712 : index
    %183 = vector.load %arg11[%c0_214, %c3712] : memref<8x4096xf32, #tpu.memory_space<vmem>>, vector<1x81xf32>
    tpu.vector_store %arg11[%c0_214, %c3712], %182 {strides = array<i32>} : memref<8x4096xf32, #tpu.memory_space<vmem>>, vector<1x81xf32>,
    %184 = vector.extract_strided_slice %121 {offsets = [30, 0], sizes = [1, 81], strides = [1, 1]} : vector<32x81xf32> to vector<1x81xf32>
    %c0_215 = arith.constant 0 : index
    %c3840 = arith.constant 3840 : index
    %185 = vector.load %arg11[%c0_215, %c3840] : memref<8x4096xf32, #tpu.memory_space<vmem>>, vector<1x81xf32>
    tpu.vector_store %arg11[%c0_215, %c3840], %184 {strides = array<i32>} : memref<8x4096xf32, #tpu.memory_space<vmem>>, vector<1x81xf32>,
    %186 = vector.extract_strided_slice %121 {offsets = [31, 0], sizes = [1, 81], strides = [1, 1]} : vector<32x81xf32> to vector<1x81xf32>
    %c0_216 = arith.constant 0 : index
    %c3968 = arith.constant 3968 : index
    %187 = vector.load %arg11[%c0_216, %c3968] : memref<8x4096xf32, #tpu.memory_space<vmem>>, vector<1x81xf32>
    tpu.vector_store %arg11[%c0_216, %c3968], %186 {strides = array<i32>} : memref<8x4096xf32, #tpu.memory_space<vmem>>, vector<1x81xf32>,
    %c0_217 = arith.constant 0 : index
    %c0_218 = arith.constant 0 : index
    %188 = vector.load %arg11[%c0_217, %c0_218] : memref<8x4096xf32, #tpu.memory_space<vmem>>, vector<8x4096xf32>
    %189 = arith.truncf %188 : vector<8x4096xf32> to vector<8x4096xbf16>
    %c0_219 = arith.constant 0 : index
    %c0_220 = arith.constant 0 : index
    %190 = vector.load %arg6[%c0_219, %c0_220] : memref<8x4096xbf16, #tpu.memory_space<vmem>>, vector<8x4096xbf16>
    %cst_221 = arith.constant dense<0.000000e+00> : vector<8x8xf32>
    %191 = tpu.matmul %189, %190, %cst_221 {dimension_numbers = #tpu.dot_dimension_numbers<[1], [1], [0], [0], [0, 0, 1, 0], [], []>} : vector<8x4096xbf16>, vector<8x4096xbf16>, vector<8x8xf32> -> vector<8x8xf32>
    %192 = vector.extract_strided_slice %191 {offsets = [0, 0], sizes = [1, 5], strides = [1, 1]} : vector<8x8xf32> to vector<1x5xf32>
    %c0_222 = arith.constant 0 : index
    %c0_223 = arith.constant 0 : index
    %193 = vector.load %arg7[%c0_222, %c0_223] : memref<1x5xf32, #tpu.memory_space<vmem>>, vector<1x5xf32>
    %194 = arith.addf %192, %193 : vector<1x5xf32>
    %c0_224 = arith.constant 0 : index
    %c0_225 = arith.constant 0 : index
    %c0_226 = arith.constant 0 : index
    %195 = vector.load %arg9[%c0_224, %c0_225, %c0_226] : memref<1x1x5xf32, #tpu.memory_space<vmem>>, vector<1x1x5xf32>
    %196 = vector.shape_cast %195 : vector<1x1x5xf32> to vector<1x5xf32>
    %197 = vector.shape_cast %194 : vector<1x5xf32> to vector<1x1x5xf32>
    tpu.vector_store %arg9[%c0_224, %c0_225, %c0_226], %197 {strides = array<i32>} : memref<1x1x5xf32, #tpu.memory_space<vmem>>, vector<1x1x5xf32>,
    return
  }
  func.func @transform_0(%arg0: i32) -> (i32, i32, i32, i32) {
    %c0_i32 = arith.constant 0 : i32
    %c0_i32_0 = arith.constant 0 : i32
    %c0_i32_1 = arith.constant 0 : i32
    %c0_i32_2 = arith.constant 0 : i32
    return %arg0, %c0_i32, %c0_i32_0, %c0_i32_1 : i32, i32, i32, i32
  }
  func.func @transform_1(%arg0: i32) -> (i32, i32) {
    %c0_i32 = arith.constant 0 : i32
    %c0_i32_0 = arith.constant 0 : i32
    %c0_i32_1 = arith.constant 0 : i32
    return %c0_i32, %c0_i32_0 : i32, i32
  }
  func.func @transform_2(%arg0: i32) -> (i32, i32) {
    %c0_i32 = arith.constant 0 : i32
    %c0_i32_0 = arith.constant 0 : i32
    %c0_i32_1 = arith.constant 0 : i32
    return %c0_i32, %c0_i32_0 : i32, i32
  }
  func.func @transform_3(%arg0: i32) -> (i32, i32) {
    %c0_i32 = arith.constant 0 : i32
    %c0_i32_0 = arith.constant 0 : i32
    %c0_i32_1 = arith.constant 0 : i32
    return %c0_i32, %c0_i32_0 : i32, i32
  }
  func.func @transform_4(%arg0: i32) -> (i32, i32) {
    %c0_i32 = arith.constant 0 : i32
    %c0_i32_0 = arith.constant 0 : i32
    %c0_i32_1 = arith.constant 0 : i32
    return %c0_i32, %c0_i32_0 : i32, i32
  }
  func.func @transform_5(%arg0: i32) -> (i32, i32) {
    %c0_i32 = arith.constant 0 : i32
    %c0_i32_0 = arith.constant 0 : i32
    %c0_i32_1 = arith.constant 0 : i32
    return %c0_i32, %c0_i32_0 : i32, i32
  }
  func.func @transform_6(%arg0: i32) -> (i32, i32) {
    %c0_i32 = arith.constant 0 : i32
    %c0_i32_0 = arith.constant 0 : i32
    %c0_i32_1 = arith.constant 0 : i32
    return %c0_i32, %c0_i32_0 : i32, i32
  }
  func.func @transform_7(%arg0: i32) -> (i32, i32) {
    %c0_i32 = arith.constant 0 : i32
    %c0_i32_0 = arith.constant 0 : i32
    %c0_i32_1 = arith.constant 0 : i32
    return %c0_i32, %c0_i32_0 : i32, i32
  }
  func.func @transform_8(%arg0: i32) -> (i32, i32, i32) {
    %c0_i32 = arith.constant 0 : i32
    %c0_i32_0 = arith.constant 0 : i32
    %c0_i32_1 = arith.constant 0 : i32
    return %arg0, %c0_i32, %c0_i32_0 : i32, i32, i32
  }
}

</mosaic_0001>

<llo_original>
// kernel: forward.1
$region0: #{forward.1}
  #allocation0 [shape = 'u32[]', space=smem, size = 0x4, offset = 0x4, fixed_abs, tag = 'smem constant byte address 0x4 - core index']
  #allocation1 [shape = 'u32[72,128]{1,0:T(1,128)}', space=vmem, size = 0x9000, scoped, tag = 'internal scratch']
  #allocation2 [shape = 'f32[16,128]{1,0:T(8,128)}', space=vmem, size = 0x2000, scoped, tag = 'scratch operand']
  #allocation3 [shape = 'f32[8,4096]{1,0:T(8,128)}', space=vmem, size = 0x20000, scoped, tag = 'scratch operand']
  %s0 = inlined_call_operand.vmem [shape: f32[2,4,8,128], index: 0, kind: input, shape index: {}]
  %s1 = inlined_call_operand.vmem [shape: bf16[16,72], index: 1, kind: input, shape index: {}]
  %s2 = inlined_call_operand.vmem [shape: f32[16,1], index: 2, kind: input, shape index: {}]
  %s3 = inlined_call_operand.vmem [shape: bf16[32,144], index: 3, kind: input, shape index: {}]
  %s4 = inlined_call_operand.vmem [shape: f32[32,1], index: 4, kind: input, shape index: {}]
  %s5 = inlined_call_operand.vmem [shape: bf16[8,4096], index: 5, kind: input, shape index: {}]
  %s6 = inlined_call_operand.vmem [shape: f32[1,5], index: 6, kind: input, shape index: {}]
  %s7 = inlined_call_operand.vmem [shape: f32[1,81], index: 7, kind: input, shape index: {}]
  %s8 = inlined_call_operand.hbm [shape: f32[2,1,5], index: 8, kind: output, shape index: {}]
  %s9 = sld [smem:[#allocation0]]
  $region65: #{forward.1} parent=0
    _
  %s11 = ssub.s32 1, %s9
  %s12 = scalar_select 0, %s11, %s9
  $region1: #{forward.1} parent=0
    #allocation4 [shape = 'u8[1024]{0}', space=vmem, size = 0x400, scoped, tag = 'output window, operand 0']
    #allocation5 [shape = 's32[2]{0}', space=sflag, size = 0x8, scoped, tag = 'scoped memory for forward.1']
    %13 = vsyncpa [#allocation5], 0
    %s14 = scalar_lea.sflag [#allocation5], 1
    %15 = vsyncpa %s14, 0
    loop: start=0, step=1, limit=4
    $region2: #{forward.1} parent=1 // loop_pre_header
      _
    $region3: #{forward.1} parent=1 // loop_header
      %s17 = sphi 0, %s21
      %p18 = scmp.ge.s32.totalorder %s17, 4
      %s27 = sphi 0, %s29
      %s30 = sphi 0, %s27
      %s31 = sphi 0, %s30
      %s47 = sphi 0, %s31
      %s51 = sphi 0, %s51
      %s53 = sphi 0, %s51
      %s54 = sphi 0, %s53
      %s68 = sphi 0, %s54
      %s72 = sphi 0, %s72
      %s74 = sphi 0, %s72
      %s75 = sphi 0, %s74
      %s89 = sphi 0, %s75
      %s93 = sphi 0, %s93
      %s95 = sphi 0, %s93
      %s96 = sphi 0, %s95
      %s110 = sphi 0, %s96
      %s114 = sphi 0, %s114
      %s116 = sphi 0, %s114
      %s117 = sphi 0, %s116
      %s131 = sphi 0, %s117
      %s135 = sphi 0, %s135
      %s137 = sphi 0, %s135
      %s138 = sphi 0, %s137
      %s152 = sphi 0, %s138
      %s156 = sphi 0, %s156
      %s158 = sphi 0, %s156
      %s159 = sphi 0, %s158
      %s173 = sphi 0, %s159
      %s177 = sphi 0, %s177
      %s179 = sphi 0, %s177
      %s180 = sphi 0, %s179
      %s194 = sphi 0, %s180
      %s200 = sphi 0, %s202
      %s203 = sphi 0, %s200
      %s204 = sphi 0, %s203
      %s220 = sphi 0, %s204
    $region4: #{forward.1} parent=1 // loop_header_branch
      %20 = sbr.rel (%p18) target = $region8
    $region5: #{forward.1} parent=1 // loop_body
      %s22 = ssub.s32 %s17, 1
      %s23 = ssub.s32 %s17, 2
      %s24 = sadd.s32 %s17, 1
      %s25 = ssub.s32 %s17, %s24
      %p26 = scmp.eq.s32.totalorder %s25, 0
      %s28 = sadd.s32 %s27, 1
      %s29 = scalar_select %p26, %s27, %s28
      %p32 = pneg %p26
      %p33 = scmp.eq.s32.totalorder %s17, 1
      %p34 = por %p32, %p33
      %p35 = scmp.ne.s32.totalorder %s27, %s30
      %p36 = scmp.eq.s32.totalorder %s17, 0
      %p37 = por %p35, %p36
      %p38 = scmp.ne.s32.totalorder %s27, %s30
      %p39 = scmp.eq.s32.totalorder %s22, 1
      %p40 = por %p38, %p39
      %p41 = scmp.ne.s32.totalorder %s30, %s31
      %p42 = scmp.eq.s32.totalorder %s22, 0
      %p43 = por %p41, %p42
      %p44 = scmp.ne.s32.totalorder %s30, %s31
      %p45 = scmp.eq.s32.totalorder %s23, 1
      %p46 = por %p44, %p45
      %p48 = scmp.ne.s32.totalorder %s31, %s47
      %p49 = scmp.eq.s32.totalorder %s23, 0
      %p50 = por %p48, %p49
      %s52 = sadd.s32 %s51, 1
      %p55 = scmp.eq.s32.totalorder %s17, 1
      %p56 = scmp.ne.s32.totalorder %s51, %s53
      %p57 = scmp.eq.s32.totalorder %s17, 0
      %p58 = por %p56, %p57
      %p59 = scmp.ne.s32.totalorder %s51, %s53
      %p60 = scmp.eq.s32.totalorder %s22, 1
      %p61 = por %p59, %p60
      %p62 = scmp.ne.s32.totalorder %s53, %s54
      %p63 = scmp.eq.s32.totalorder %s22, 0
      %p64 = por %p62, %p63
      %p65 = scmp.ne.s32.totalorder %s53, %s54
      %p66 = scmp.eq.s32.totalorder %s23, 1
      %p67 = por %p65, %p66
      %p69 = scmp.ne.s32.totalorder %s54, %s68
      %p70 = scmp.eq.s32.totalorder %s23, 0
      %p71 = por %p69, %p70
      %s73 = sadd.s32 %s72, 1
      %p76 = scmp.eq.s32.totalorder %s17, 1
      %p77 = scmp.ne.s32.totalorder %s72, %s74
      %p78 = scmp.eq.s32.totalorder %s17, 0
      %p79 = por %p77, %p78
      %p80 = scmp.ne.s32.totalorder %s72, %s74
      %p81 = scmp.eq.s32.totalorder %s22, 1
      %p82 = por %p80, %p81
      %p83 = scmp.ne.s32.totalorder %s74, %s75
      %p84 = scmp.eq.s32.totalorder %s22, 0
      %p85 = por %p83, %p84
      %p86 = scmp.ne.s32.totalorder %s74, %s75
      %p87 = scmp.eq.s32.totalorder %s23, 1
      %p88 = por %p86, %p87
      %p90 = scmp.ne.s32.totalorder %s75, %s89
      %p91 = scmp.eq.s32.totalorder %s23, 0
      %p92 = por %p90, %p91
      %s94 = sadd.s32 %s93, 1
      %p97 = scmp.eq.s32.totalorder %s17, 1
      %p98 = scmp.ne.s32.totalorder %s93, %s95
      %p99 = scmp.eq.s32.totalorder %s17, 0
      %p100 = por %p98, %p99
      %p101 = scmp.ne.s32.totalorder %s93, %s95
      %p102 = scmp.eq.s32.totalorder %s22, 1
      %p103 = por %p101, %p102
      %p104 = scmp.ne.s32.totalorder %s95, %s96
      %p105 = scmp.eq.s32.totalorder %s22, 0
      %p106 = por %p104, %p105
      %p107 = scmp.ne.s32.totalorder %s95, %s96
      %p108 = scmp.eq.s32.totalorder %s23, 1
      %p109 = por %p107, %p108
      %p111 = scmp.ne.s32.totalorder %s96, %s110
      %p112 = scmp.eq.s32.totalorder %s23, 0
      %p113 = por %p111, %p112
      %s115 = sadd.s32 %s114, 1
      %p118 = scmp.eq.s32.totalorder %s17, 1
      %p119 = scmp.ne.s32.totalorder %s114, %s116
      %p120 = scmp.eq.s32.totalorder %s17, 0
      %p121 = por %p119, %p120
      %p122 = scmp.ne.s32.totalorder %s114, %s116
      %p123 = scmp.eq.s32.totalorder %s22, 1
      %p124 = por %p122, %p123
      %p125 = scmp.ne.s32.totalorder %s116, %s117
      %p126 = scmp.eq.s32.totalorder %s22, 0
      %p127 = por %p125, %p126
      %p128 = scmp.ne.s32.totalorder %s116, %s117
      %p129 = scmp.eq.s32.totalorder %s23, 1
      %p130 = por %p128, %p129
      %p132 = scmp.ne.s32.totalorder %s117, %s131
      %p133 = scmp.eq.s32.totalorder %s23, 0
      %p134 = por %p132, %p133
      %s136 = sadd.s32 %s135, 1
      %p139 = scmp.eq.s32.totalorder %s17, 1
      %p140 = scmp.ne.s32.totalorder %s135, %s137
      %p141 = scmp.eq.s32.totalorder %s17, 0
      %p142 = por %p140, %p141
      %p143 = scmp.ne.s32.totalorder %s135, %s137
      %p144 = scmp.eq.s32.totalorder %s22, 1
      %p145 = por %p143, %p144
      %p146 = scmp.ne.s32.totalorder %s137, %s138
      %p147 = scmp.eq.s32.totalorder %s22, 0
      %p148 = por %p146, %p147
      %p149 = scmp.ne.s32.totalorder %s137, %s138
      %p150 = scmp.eq.s32.totalorder %s23, 1
      %p151 = por %p149, %p150
      %p153 = scmp.ne.s32.totalorder %s138, %s152
      %p154 = scmp.eq.s32.totalorder %s23, 0
      %p155 = por %p153, %p154
      %s157 = sadd.s32 %s156, 1
      %p160 = scmp.eq.s32.totalorder %s17, 1
      %p161 = scmp.ne.s32.totalorder %s156, %s158
      %p162 = scmp.eq.s32.totalorder %s17, 0
      %p163 = por %p161, %p162
      %p164 = scmp.ne.s32.totalorder %s156, %s158
      %p165 = scmp.eq.s32.totalorder %s22, 1
      %p166 = por %p164, %p165
      %p167 = scmp.ne.s32.totalorder %s158, %s159
      %p168 = scmp.eq.s32.totalorder %s22, 0
      %p169 = por %p167, %p168
      %p170 = scmp.ne.s32.totalorder %s158, %s159
      %p171 = scmp.eq.s32.totalorder %s23, 1
      %p172 = por %p170, %p171
      %p174 = scmp.ne.s32.totalorder %s159, %s173
      %p175 = scmp.eq.s32.totalorder %s23, 0
      %p176 = por %p174, %p175
      %s178 = sadd.s32 %s177, 1
      %p181 = scmp.eq.s32.totalorder %s17, 1
      %p182 = scmp.ne.s32.totalorder %s177, %s179
      %p183 = scmp.eq.s32.totalorder %s17, 0
      %p184 = por %p182, %p183
      %p185 = scmp.ne.s32.totalorder %s177, %s179
      %p186 = scmp.eq.s32.totalorder %s22, 1
      %p187 = por %p185, %p186
      %p188 = scmp.ne.s32.totalorder %s179, %s180
      %p189 = scmp.eq.s32.totalorder %s22, 0
      %p190 = por %p188, %p189
      %p191 = scmp.ne.s32.totalorder %s179, %s180
      %p192 = scmp.eq.s32.totalorder %s23, 1
      %p193 = por %p191, %p192
      %p195 = scmp.ne.s32.totalorder %s180, %s194
      %p196 = scmp.eq.s32.totalorder %s23, 0
      %p197 = por %p195, %p196
      %s198 = ssub.s32 %s17, %s24
      %p199 = scmp.eq.s32.totalorder %s198, 0
      %s201 = sadd.s32 %s200, 1
      %s202 = scalar_select %p199, %s200, %s201
      %p205 = pneg %p199
      %p206 = scmp.eq.s32.totalorder %s17, 1
      %p207 = por %p205, %p206
      %p208 = scmp.ne.s32.totalorder %s200, %s203
      %p209 = scmp.eq.s32.totalorder %s17, 0
      %p210 = por %p208, %p209
      %p211 = scmp.ne.s32.totalorder %s200, %s203
      %p212 = scmp.eq.s32.totalorder %s22, 1
      %p213 = por %p211, %p212
      %p214 = scmp.ne.s32.totalorder %s203, %s204
      %p215 = scmp.eq.s32.totalorder %s22, 0
      %p216 = por %p214, %p215
      %p217 = scmp.ne.s32.totalorder %s203, %s204
      %p218 = scmp.eq.s32.totalorder %s23, 1
      %p219 = por %p217, %p218
      %p221 = scmp.ne.s32.totalorder %s204, %s220
      %p222 = scmp.eq.s32.totalorder %s23, 0
      %p223 = por %p221, %p222
      %p224 = scmp.le.s32.totalorder 1, %s17
      %p225 = scmp.lt.s32.totalorder %s17, 3
      %p226 = pnand %p224, %p225
      %p227 = pneg %p226
      // Predicated region
      $region9: #{forward.1} parent=5 // pred_check
        _
      $region10: #{forward.1} parent=5 // pred_check_branch
        %229 = sbr.rel (%p226) target = $region12
      $region11: #{forward.1} parent=5 // pred_region
        %s230 = ssub.s32 %s17, 1
        // Predicated region
        $region13: #{forward.1} parent=11 // pred_check
          %p231 = pneg %p64
        $region14: #{forward.1} parent=11 // pred_check_branch
          %233 = sbr.rel (%p231) target = $region16
        $region15: #{forward.1} parent=11 // pred_region
          _
        $region16: #{forward.1} parent=11 // pred_fallthru
          _
        // Predicated region
        $region17: #{forward.1} parent=11 // pred_check
          %p234 = pneg %p85
        $region18: #{forward.1} parent=11 // pred_check_branch
          %236 = sbr.rel (%p234) target = $region20
        $region19: #{forward.1} parent=11 // pred_region
          _
        $region20: #{forward.1} parent=11 // pred_fallthru
          _
        // Predicated region
        $region21: #{forward.1} parent=11 // pred_check
          %p237 = pneg %p106
        $region22: #{forward.1} parent=11 // pred_check_branch
          %239 = sbr.rel (%p237) target = $region24
        $region23: #{forward.1} parent=11 // pred_region
          _
        $region24: #{forward.1} parent=11 // pred_fallthru
          _
        // Predicated region
        $region25: #{forward.1} parent=11 // pred_check
          %p240 = pneg %p127
        $region26: #{forward.1} parent=11 // pred_check_branch
          %242 = sbr.rel (%p240) target = $region28
        $region27: #{forward.1} parent=11 // pred_region
          _
        $region28: #{forward.1} parent=11 // pred_fallthru
          _
        // Predicated region
        $region29: #{forward.1} parent=11 // pred_check
          %p243 = pneg %p148
        $region30: #{forward.1} parent=11 // pred_check_branch
          %245 = sbr.rel (%p243) target = $region32
        $region31: #{forward.1} parent=11 // pred_region
          _
        $region32: #{forward.1} parent=11 // pred_fallthru
          _
        // Predicated region
        $region33: #{forward.1} parent=11 // pred_check
          %p246 = pneg %p169
        $region34: #{forward.1} parent=11 // pred_check_branch
          %248 = sbr.rel (%p246) target = $region36
        $region35: #{forward.1} parent=11 // pred_region
          _
        $region36: #{forward.1} parent=11 // pred_fallthru
          _
        // Predicated region
        $region37: #{forward.1} parent=11 // pred_check
          %p249 = pneg %p190
        $region38: #{forward.1} parent=11 // pred_check_branch
          %251 = sbr.rel (%p249) target = $region40
        $region39: #{forward.1} parent=11 // pred_region
          _
        $region40: #{forward.1} parent=11 // pred_fallthru
          _
      $region12: #{forward.1} parent=5 // pred_fallthru
        _
      %p252 = scmp.lt.s32.totalorder %s17, 2
      // Predicated region
      $region41: #{forward.1} parent=5 // pred_check
        %p253 = pneg %p252
      $region42: #{forward.1} parent=5 // pred_check_branch
        %255 = sbr.rel (%p253) target = $region44
      $region43: #{forward.1} parent=5 // pred_region
        // Predicated region
        $region45: #{forward.1} parent=43 // pred_check
          %p256 = pneg %p37
        $region46: #{forward.1} parent=43 // pred_check_branch
          %258 = sbr.rel (%p256) target = $region48
        $region47: #{forward.1} parent=43 // pred_region
          %p259 = scmp.lt.s32.totalorder %s17, 1
          %s260 = scalar_select %p259, %s17, 1
          %s261 = smul.addr %s260, 4
          %s262 = smul.addr %s261, 8
          %s263 = scalar_lea.vmem %s0, %s262
        $region48: #{forward.1} parent=43 // pred_fallthru
          _
      $region44: #{forward.1} parent=5 // pred_fallthru
        _
      %p264 = scmp.le.s32.totalorder 1, %s17
      %p265 = scmp.lt.s32.totalorder %s17, 3
      %p266 = pnand %p264, %p265
      %p267 = pneg %p266
      // Predicated region
      $region49: #{forward.1} parent=5 // pred_check
        _
      $region50: #{forward.1} parent=5 // pred_check_branch
        %269 = sbr.rel (%p266) target = $region52
      $region51: #{forward.1} parent=5 // pred_region
        %s270 = ssub.s32 %s17, 1
        %p271 = scmp.lt.s32.totalorder %s22, 1
        %s272 = scalar_select %p271, %s22, 1
        %s273 = smul.addr %s272, 4
        %s274 = smul.addr %s273, 8
        %s275 = scalar_lea.vmem %s0, %s274
        %p276 = pneg %p43
        %p277 = pneg %p40
        %p278 = pneg %p64
        %p279 = pneg %p61
        %p280 = pneg %p85
        %p281 = pneg %p82
        %p282 = pneg %p106
        %p283 = pneg %p103
        %p284 = pneg %p127
        %p285 = pneg %p124
        %p286 = pneg %p148
        %p287 = pneg %p145
        %p288 = pneg %p169
        %p289 = pneg %p166
        %p290 = pneg %p190
        %p291 = pneg %p187
        %p292 = pneg %p216
        %p293 = pneg %p213
        %s294 = sand.u32 %s203, 1
        %s295 = scalar_lea.sflag [#allocation5], %s294
        %s296 = sand.u32 %s203, 1
        %s297 = scalar_lea.vmem [#allocation4], %s296
        %p298 = scmp.lt.s32.totalorder %s22, 1
        %s299 = scalar_select %p298, %s22, 1
        %s300 = smul.addr %s299, 4
        %s301 = smul.addr %s300, 8
        %s302 = scalar_lea.vmem %s0, %s301
        %v304 = vld [vmem:[%s302] sm:$0xff]
        %s305 = scalar_lea.vmem %s302, 8
        %v306 = vld [vmem:[%s305] sm:$0xff]
        %s307 = scalar_lea.vmem %s302, 16
        %v308 = vld [vmem:[%s307] sm:$0xff]
        %s309 = scalar_lea.vmem %s302, 24
        %v310 = vld [vmem:[%s309] sm:$0xff]
        %312 = vrot.lane.b32.xlu0 %v304, 127
        %v313 = vpop.permute.xlu0 %312
        %316 = vrot.lane.b32.xlu0 %v308, 127
        %v317 = vpop.permute.xlu0 %316
        %319 = vrot.lane.b32.xlu0 %v304, 119
        %v320 = vpop.permute.xlu0 %319
        %323 = vrot.lane.b32.xlu0 %v306, 119
        %v324 = vpop.permute.xlu0 %323
        %326 = vrot.lane.b32.xlu0 %v304, 118
        %v327 = vpop.permute.xlu0 %326
        %v329 = vpack.c.bf16 %v306, %v304
        %v330 = vpack.c.bf16 %v308, %v313
        %v331 = vpack.c.bf16 %v317, %v310
        %v332 = vpack.c.bf16 %v324, %v320
        %v333 = vpack.c.bf16 %v327, %v327
        %v334 = vld [vmem:[%s1] sm:$0xf]
        %v335 = vld [vmem:[%s1 + $0x4] sm:$0xf]
        %v338 = vunpack.c.l.b16 %v334
        %v339 = vunpack.c.l.b16 %v335
        %v340 = vpack.c.b16 %v339, %v338
        %vm341 = vcmask 588800
        %v343 = vsel %vm341, %v340, 0
        %vm345 = vcmask 1043456
        %v347 = vsel %vm345, %v333, 0
        %349 = vmatpush.bf16.msra.mxu0 0
        %350 = vmatpush.bf16.msra.mxu0 0
        %351 = vmatpush.bf16.msra.mxu0 0
        %352 = vmatpush.bf16.msra.mxu0 %v347
        %353 = vmatpush.bf16.msra.mxu0 %v332
        %354 = vmatpush.bf16.msra.mxu0 %v331
        %355 = vmatpush.bf16.msra.mxu0 %v330
        %356 = vmatpush.bf16.msra.mxu0 %v329
        %357 = vmatmul.bf16.gmra.mxu0 %v343
        %v358 = vpop.f32.mrf.mxu0
        %v359 = vadd.f32 0.0, %v358
        %v360 = vpop.f32.mrf.mxu0
        %v361 = vadd.f32 0.0, %v360
        %362 = vdwg.mxu0
        %363 = vrot.lane.b32.xlu0 %v306, 127
        %v364 = vpop.permute.xlu0 %363
        %367 = vrot.lane.b32.xlu0 %v310, 127
        %v368 = vpop.permute.xlu0 %367
        %370 = vrot.lane.b32.xlu0 %v306, 118
        %v371 = vpop.permute.xlu0 %370
        %v373 = vpack.c.bf16 %v313, %v306
        %v374 = vpack.c.bf16 %v310, %v364
        %v375 = vpack.c.bf16 %v368, %v317
        %v376 = vpack.c.bf16 %v327, %v324
        %v377 = vpack.c.bf16 %v371, %v371
        %v379 = vsel %vm345, %v377, 0
        %381 = vmatpush.bf16.msra.mxu0 0
        %382 = vmatpush.bf16.msra.mxu0 0
        %383 = vmatpush.bf16.msra.mxu0 0
        %384 = vmatpush.bf16.msra.mxu0 %v379
        %385 = vmatpush.bf16.msra.mxu0 %v376
        %386 = vmatpush.bf16.msra.mxu0 %v375
        %387 = vmatpush.bf16.msra.mxu0 %v374
        %388 = vmatpush.bf16.msra.mxu0 %v373
        %389 = vmatmul.bf16.gmra.mxu0 %v343
        %v390 = vpop.f32.mrf.mxu0
        %v391 = vadd.f32 0.0, %v390
        %v392 = vpop.f32.mrf.mxu0
        %v393 = vadd.f32 0.0, %v392
        %394 = vdwg.mxu0
        %v395 = vmax.f32 %v359, %v391
        %v396 = vmax.f32 %v361, %v393
        %397 = vrot.lane.b32.xlu0 %v308, 119
        %v398 = vpop.permute.xlu0 %397
        %400 = vrot.lane.b32.xlu0 %v310, 119
        %v401 = vpop.permute.xlu0 %400
        %403 = vrot.lane.b32.xlu0 %v308, 118
        %v404 = vpop.permute.xlu0 %403
        %v406 = vpack.c.bf16 %v310, %v308
        %v407 = vpack.c.bf16 %v320, %v317
        %v408 = vpack.c.bf16 %v401, %v398
        %v409 = vpack.c.bf16 %v404, %v404
        %v411 = vsel %vm345, %v409, 0
        %413 = vmatpush.bf16.msra.mxu0 0
        %414 = vmatpush.bf16.msra.mxu0 0
        %415 = vmatpush.bf16.msra.mxu0 0
        %416 = vmatpush.bf16.msra.mxu0 %v411
        %417 = vmatpush.bf16.msra.mxu0 %v408
        %418 = vmatpush.bf16.msra.mxu0 %v376
        %419 = vmatpush.bf16.msra.mxu0 %v407
        %420 = vmatpush.bf16.msra.mxu0 %v406
        %421 = vmatmul.bf16.gmra.mxu0 %v343
        %v422 = vpop.f32.mrf.mxu0
        %v423 = vadd.f32 0.0, %v422
        %v424 = vpop.f32.mrf.mxu0
        %v425 = vadd.f32 0.0, %v424
        %426 = vdwg.mxu0
        %v427 = vmax.f32 %v395, %v423
        %v428 = vmax.f32 %v396, %v425
        %429 = vrot.lane.b32.xlu0 %v310, 118
        %v430 = vpop.permute.xlu0 %429
        %v432 = vpack.c.bf16 %v324, %v368
        %v433 = vpack.c.bf16 %v371, %v327
        %v434 = vpack.c.bf16 %v404, %v401
        %v435 = vpack.c.bf16 %v430, %v430
        %v437 = vsel %vm345, %v435, 0
        %439 = vmatpush.bf16.msra.mxu0 0
        %440 = vmatpush.bf16.msra.mxu0 0
        %441 = vmatpush.bf16.msra.mxu0 0
        %442 = vmatpush.bf16.msra.mxu0 %v437
        %443 = vmatpush.bf16.msra.mxu0 %v434
        %444 = vmatpush.bf16.msra.mxu0 %v433
        %445 = vmatpush.bf16.msra.mxu0 %v432
        %446 = vmatpush.bf16.msra.mxu0 %v331
        %447 = vmatmul.bf16.gmra.mxu0 %v343
        %v448 = vpop.f32.mrf.mxu0
        %v449 = vadd.f32 0.0, %v448
        %v450 = vpop.f32.mrf.mxu0
        %v451 = vadd.f32 0.0, %v450
        %452 = vdwg.mxu0
        %v453 = vmax.f32 %v427, %v449
        %v454 = vmax.f32 %v428, %v451
        %v455 = vld [vmem:[%s2] sm:$0xff]
        %v456 = vld [vmem:[%s2 + $0x8] sm:$0xff]
        %458 = vset.pattern.permute.xlu0 0
        %459 = vperm.xlu0 %458, %v455
        %v460 = vpop.permute.xlu0 %459
        %463 = vset.pattern.permute.xlu0 0
        %464 = vperm.xlu0 %463, %v456
        %v465 = vpop.permute.xlu0 %464
        %v467 = vadd.f32 %v453, %v460
        %v468 = vadd.f32 %v454, %v465
        %v469 = vmax.f32 %v467, 0.0
        %v470 = vmax.f32 %v468, 0.0
        %v471 = vld [vmem:[%s7] sm:$0x1]
        %v473 = vperm.slane %v471, 0
        %v475 = vmul.f32 %v469, %v473
        %v476 = vmul.f32 %v470, %v473
        %vm477 = vcmask 80896
        %478 = vst.msk [vmem:[#allocation2] sm:$0xff] %vm477, 0.0
        %479 = vst.msk [vmem:[#allocation2 + $0x8] sm:$0xff] %vm477, 0.0
        %482 = vrot.lane.b32.xlu0 %v475, 10
        %v483 = vpop.permute.xlu0 %482
        %484 = vrot.lane.b32.xlu0 %v476, 10
        %v485 = vpop.permute.xlu0 %484
        %vm488 = vcmask 744528
        %489 = vst.msk [vmem:[#allocation2] sm:$0xff] %vm488, %v483
        %490 = vst.msk [vmem:[#allocation2 + $0x8] sm:$0xff] %vm488, %v485
        %vm491 = vcmask 1048280
        %492 = vst.msk [vmem:[#allocation2] sm:$0xff] %vm491, 0.0
        %493 = vst.msk [vmem:[#allocation2 + $0x8] sm:$0xff] %vm491, 0.0
        %v494 = vld [vmem:[#allocation2] sm:$0xff]
        %v495 = vld [vmem:[#allocation2 + $0x8] sm:$0xff]
        %498 = vrot.lane.b32.xlu0 %v494, 127
        %v499 = vpop.permute.xlu0 %498
        %500 = vrot.lane.b32.xlu0 %v495, 127
        %v501 = vpop.permute.xlu0 %500
        %504 = vrot.lane.b32.xlu0 %v494, 126
        %v505 = vpop.permute.xlu0 %504
        %506 = vrot.lane.b32.xlu0 %v495, 126
        %v507 = vpop.permute.xlu0 %506
        %510 = vrot.lane.b32.xlu0 %v494, 119
        %v511 = vpop.permute.xlu0 %510
        %512 = vrot.lane.b32.xlu0 %v495, 119
        %v513 = vpop.permute.xlu0 %512
        %516 = vrot.lane.b32.xlu0 %v494, 118
        %v517 = vpop.permute.xlu0 %516
        %518 = vrot.lane.b32.xlu0 %v495, 118
        %v519 = vpop.permute.xlu0 %518
        %522 = vrot.lane.b32.xlu0 %v494, 117
        %v523 = vpop.permute.xlu0 %522
        %524 = vrot.lane.b32.xlu0 %v495, 117
        %v525 = vpop.permute.xlu0 %524
        %528 = vrot.lane.b32.xlu0 %v494, 110
        %v529 = vpop.permute.xlu0 %528
        %530 = vrot.lane.b32.xlu0 %v495, 110
        %v531 = vpop.permute.xlu0 %530
        %534 = vrot.lane.b32.xlu0 %v494, 109
        %v535 = vpop.permute.xlu0 %534
        %536 = vrot.lane.b32.xlu0 %v495, 109
        %v537 = vpop.permute.xlu0 %536
        %540 = vrot.lane.b32.xlu0 %v494, 108
        %v541 = vpop.permute.xlu0 %540
        %542 = vrot.lane.b32.xlu0 %v495, 108
        %v543 = vpop.permute.xlu0 %542
        %v546 = vpack.c.bf16 %v495, %v494
        %v547 = vpack.c.bf16 %v501, %v499
        %v548 = vpack.c.bf16 %v507, %v505
        %v549 = vpack.c.bf16 %v513, %v511
        %v550 = vpack.c.bf16 %v519, %v517
        %v551 = vpack.c.bf16 %v525, %v523
        %v552 = vpack.c.bf16 %v531, %v529
        %v553 = vpack.c.bf16 %v537, %v535
        %v554 = vpack.c.bf16 %v543, %v541
        %v555 = vld [vmem:[%s3] sm:$0xff]
        %v556 = vld [vmem:[%s3 + $0x8] sm:$0xff]
        %v557 = vld [vmem:[%s3 + $0x10] sm:$0xff]
        %v558 = vld [vmem:[%s3 + $0x18] sm:$0xff]
        %v559 = vld [vmem:[%s4] sm:$0xff]
        %v560 = vld [vmem:[%s4 + $0x8] sm:$0xff]
        %v561 = vld [vmem:[%s4 + $0x10] sm:$0xff]
        %v562 = vld [vmem:[%s4 + $0x18] sm:$0xff]
        %564 = vset.pattern.permute.xlu0 0
        %565 = vperm.xlu0 %564, %v559
        %v566 = vpop.permute.xlu0 %565
        %569 = vset.pattern.permute.xlu0 0
        %570 = vperm.xlu0 %569, %v560
        %v571 = vpop.permute.xlu0 %570
        %574 = vset.pattern.permute.xlu0 0
        %575 = vperm.xlu0 %574, %v561
        %v576 = vpop.permute.xlu0 %575
        %579 = vset.pattern.permute.xlu0 0
        %580 = vperm.xlu0 %579, %v562
        %v581 = vpop.permute.xlu0 %580
        %v587 = vunpack.c.l.b16 %v555
        %v588 = vunpack.c.h.b16 %v555
        %v589 = vunpack.c.l.b16 %v556
        %v590 = vunpack.c.h.b16 %v556
        %v591 = vunpack.c.l.b16 %v557
        %v592 = vunpack.c.h.b16 %v557
        %v593 = vunpack.c.l.b16 %v558
        %v594 = vunpack.c.h.b16 %v558
        %v595 = vpack.c.b16 %v589, %v587
        %v596 = vpack.c.b16 %v590, %v588
        %v597 = vpack.c.b16 %v593, %v591
        %v598 = vpack.c.b16 %v594, %v592
        %vm601 = vcmask 130048
        %v603 = vsel %vm601, %v596, 0
        %v606 = vsel %vm601, %v598, 0
        %608 = vmatpush.bf16.msra.mxu0 %v553
        %609 = vmatpush.bf16.msra.mxu0 %v552
        %610 = vmatpush.bf16.msra.mxu0 %v551
        %611 = vmatpush.bf16.msra.mxu0 %v550
        %612 = vmatpush.bf16.msra.mxu0 %v549
        %613 = vmatpush.bf16.msra.mxu0 %v548
        %614 = vmatpush.bf16.msra.mxu0 %v547
        %615 = vmatpush.bf16.msra.mxu0 %v546
        %616 = vmatmul.bf16.gmra.mxu0 %v595
        %v617 = vpop.f32.mrf.mxu0
        %v618 = vadd.f32 %v566, %v617
        %v619 = vpop.f32.mrf.mxu0
        %v620 = vadd.f32 %v571, %v619
        %621 = vmatmul.bf16.gmra.mxu0 %v597
        %v622 = vpop.f32.mrf.mxu0
        %v623 = vadd.f32 %v576, %v622
        %v624 = vpop.f32.mrf.mxu0
        %v625 = vadd.f32 %v581, %v624
        %626 = vdwg.mxu0
        %627 = vmatpush.bf16.msra.mxu0 0
        %628 = vmatpush.bf16.msra.mxu0 0
        %629 = vmatpush.bf16.msra.mxu0 0
        %630 = vmatpush.bf16.msra.mxu0 0
        %631 = vmatpush.bf16.msra.mxu0 0
        %632 = vmatpush.bf16.msra.mxu0 0
        %633 = vmatpush.bf16.msra.mxu0 0
        %634 = vmatpush.bf16.msra.mxu0 %v554
        %635 = vmatmul.bf16.gmra.mxu0 %v603
        %v636 = vpop.f32.mrf.mxu0
        %v637 = vadd.f32 %v618, %v636
        %v638 = vpop.f32.mrf.mxu0
        %v639 = vadd.f32 %v620, %v638
        %640 = vmatmul.bf16.gmra.mxu0 %v606
        %v641 = vpop.f32.mrf.mxu0
        %v642 = vadd.f32 %v623, %v641
        %v643 = vpop.f32.mrf.mxu0
        %v644 = vadd.f32 %v625, %v643
        %645 = vdwg.mxu0
        %v646 = vmax.f32 %v637, 0.0
        %v647 = vmax.f32 %v639, 0.0
        %v648 = vmax.f32 %v642, 0.0
        %v649 = vmax.f32 %v644, 0.0
        %650 = vst [vmem:[#allocation3] ss:$8 sm:$0xf] 0.0
        %651 = vst [vmem:[#allocation3] ss:$8 sm:$0xf0] 0.0
        %s652 = scalar_lea.vmem [#allocation3], 64
        %653 = vst [vmem:[%s652] ss:$8 sm:$0xf] 0.0
        %654 = vst [vmem:[%s652] ss:$8 sm:$0xf0] 0.0
        %s655 = scalar_lea.vmem [#allocation3], 128
        %656 = vst [vmem:[%s655] ss:$8 sm:$0xf] 0.0
        %657 = vst [vmem:[%s655] ss:$8 sm:$0xf0] 0.0
        %s658 = scalar_lea.vmem [#allocation3], 192
        %659 = vst [vmem:[%s658] ss:$8 sm:$0xf] 0.0
        %660 = vst [vmem:[%s658] ss:$8 sm:$0xf0] 0.0
        %vm661 = vcmask 655360
        %662 = vst.msk [vmem:[#allocation3] sm:$0x1] %vm661, %v646
        %v664 = vrot.slane %v646, 1
        %666 = vst.msk [vmem:[#allocation3 + $0x8] sm:$0x1] %vm661, %v664
        %v667 = vrot.slane %v646, 2
        %669 = vst.msk [vmem:[#allocation3 + $0x10] sm:$0x1] %vm661, %v667
        %v670 = vrot.slane %v646, 3
        %672 = vst.msk [vmem:[#allocation3 + $0x18] sm:$0x1] %vm661, %v670
        %v673 = vrot.slane %v646, 4
        %675 = vst.msk [vmem:[#allocation3 + $0x20] sm:$0x1] %vm661, %v673
        %v676 = vrot.slane %v646, 5
        %678 = vst.msk [vmem:[#allocation3 + $0x28] sm:$0x1] %vm661, %v676
        %v679 = vrot.slane %v646, 6
        %681 = vst.msk [vmem:[#allocation3 + $0x30] sm:$0x1] %vm661, %v679
        %v682 = vrot.slane %v646, 7
        %684 = vst.msk [vmem:[#allocation3 + $0x38] sm:$0x1] %vm661, %v682
        %685 = vst.msk [vmem:[#allocation3 + $0x40] sm:$0x1] %vm661, %v647
        %v687 = vrot.slane %v647, 1
        %689 = vst.msk [vmem:[#allocation3 + $0x48] sm:$0x1] %vm661, %v687
        %v690 = vrot.slane %v647, 2
        %692 = vst.msk [vmem:[#allocation3 + $0x50] sm:$0x1] %vm661, %v690
        %v693 = vrot.slane %v647, 3
        %695 = vst.msk [vmem:[#allocation3 + $0x58] sm:$0x1] %vm661, %v693
        %v696 = vrot.slane %v647, 4
        %698 = vst.msk [vmem:[#allocation3 + $0x60] sm:$0x1] %vm661, %v696
        %v699 = vrot.slane %v647, 5
        %701 = vst.msk [vmem:[#allocation3 + $0x68] sm:$0x1] %vm661, %v699
        %v702 = vrot.slane %v647, 6
        %704 = vst.msk [vmem:[#allocation3 + $0x70] sm:$0x1] %vm661, %v702
        %v705 = vrot.slane %v647, 7
        %707 = vst.msk [vmem:[#allocation3 + $0x78] sm:$0x1] %vm661, %v705
        %708 = vst.msk [vmem:[#allocation3 + $0x80] sm:$0x1] %vm661, %v648
        %v710 = vrot.slane %v648, 1
        %712 = vst.msk [vmem:[#allocation3 + $0x88] sm:$0x1] %vm661, %v710
        %v713 = vrot.slane %v648, 2
        %715 = vst.msk [vmem:[#allocation3 + $0x90] sm:$0x1] %vm661, %v713
        %v716 = vrot.slane %v648, 3
        %718 = vst.msk [vmem:[#allocation3 + $0x98] sm:$0x1] %vm661, %v716
        %v719 = vrot.slane %v648, 4
        %721 = vst.msk [vmem:[#allocation3 + $0xa0] sm:$0x1] %vm661, %v719
        %v722 = vrot.slane %v648, 5
        %724 = vst.msk [vmem:[#allocation3 + $0xa8] sm:$0x1] %vm661, %v722
        %v725 = vrot.slane %v648, 6
        %727 = vst.msk [vmem:[#allocation3 + $0xb0] sm:$0x1] %vm661, %v725
        %v728 = vrot.slane %v648, 7
        %730 = vst.msk [vmem:[#allocation3 + $0xb8] sm:$0x1] %vm661, %v728
        %731 = vst.msk [vmem:[#allocation3 + $0xc0] sm:$0x1] %vm661, %v649
        %v733 = vrot.slane %v649, 1
        %735 = vst.msk [vmem:[#allocation3 + $0xc8] sm:$0x1] %vm661, %v733
        %v736 = vrot.slane %v649, 2
        %738 = vst.msk [vmem:[#allocation3 + $0xd0] sm:$0x1] %vm661, %v736
        %v739 = vrot.slane %v649, 3
        %741 = vst.msk [vmem:[#allocation3 + $0xd8] sm:$0x1] %vm661, %v739
        %v742 = vrot.slane %v649, 4
        %744 = vst.msk [vmem:[#allocation3 + $0xe0] sm:$0x1] %vm661, %v742
        %v745 = vrot.slane %v649, 5
        %747 = vst.msk [vmem:[#allocation3 + $0xe8] sm:$0x1] %vm661, %v745
        %v748 = vrot.slane %v649, 6
        %750 = vst.msk [vmem:[#allocation3 + $0xf0] sm:$0x1] %vm661, %v748
        %v751 = vrot.slane %v649, 7
        %753 = vst.msk [vmem:[#allocation3 + $0xf8] sm:$0x1] %vm661, %v751
        %v754 = vld [vmem:[#allocation3] sm:$0xff]
        %v755 = vld [vmem:[#allocation3 + $0x8] sm:$0xff]
        %v756 = vld [vmem:[#allocation3 + $0x10] sm:$0xff]
        %v757 = vld [vmem:[#allocation3 + $0x18] sm:$0xff]
        %v758 = vld [vmem:[#allocation3 + $0x20] sm:$0xff]
        %v759 = vld [vmem:[#allocation3 + $0x28] sm:$0xff]
        %v760 = vld [vmem:[#allocation3 + $0x30] sm:$0xff]
        %v761 = vld [vmem:[#allocation3 + $0x38] sm:$0xff]
        %v762 = vld [vmem:[#allocation3 + $0x40] sm:$0xff]
        %v763 = vld [vmem:[#allocation3 + $0x48] sm:$0xff]
        %v764 = vld [vmem:[#allocation3 + $0x50] sm:$0xff]
        %v765 = vld [vmem:[#allocation3 + $0x58] sm:$0xff]
        %v766 = vld [vmem:[#allocation3 + $0x60] sm:$0xff]
        %v767 = vld [vmem:[#allocation3 + $0x68] sm:$0xff]
        %v768 = vld [vmem:[#allocation3 + $0x70] sm:$0xff]
        %v769 = vld [vmem:[#allocation3 + $0x78] sm:$0xff]
        %v770 = vld [vmem:[#allocation3 + $0x80] sm:$0xff]
        %v771 = vld [vmem:[#allocation3 + $0x88] sm:$0xff]
        %v772 = vld [vmem:[#allocation3 + $0x90] sm:$0xff]
        %v773 = vld [vmem:[#allocation3 + $0x98] sm:$0xff]
        %v774 = vld [vmem:[#allocation3 + $0xa0] sm:$0xff]
        %v775 = vld [vmem:[#allocation3 + $0xa8] sm:$0xff]
        %v776 = vld [vmem:[#allocation3 + $0xb0] sm:$0xff]
        %v777 = vld [vmem:[#allocation3 + $0xb8] sm:$0xff]
        %v778 = vld [vmem:[#allocation3 + $0xc0] sm:$0xff]
        %v779 = vld [vmem:[#allocation3 + $0xc8] sm:$0xff]
        %v780 = vld [vmem:[#allocation3 + $0xd0] sm:$0xff]
        %v781 = vld [vmem:[#allocation3 + $0xd8] sm:$0xff]
        %v782 = vld [vmem:[#allocation3 + $0xe0] sm:$0xff]
        %v783 = vld [vmem:[#allocation3 + $0xe8] sm:$0xff]
        %v784 = vld [vmem:[#allocation3 + $0xf0] sm:$0xff]
        %v785 = vld [vmem:[#allocation3 + $0xf8] sm:$0xff]
        %v786 = vpack.c.bf16 %v754, %v754
        %v787 = vpack.c.bf16 %v755, %v755
        %v788 = vpack.c.bf16 %v756, %v756
        %v789 = vpack.c.bf16 %v757, %v757
        %v790 = vpack.c.bf16 %v758, %v758
        %v791 = vpack.c.bf16 %v759, %v759
        %v792 = vpack.c.bf16 %v760, %v760
        %v793 = vpack.c.bf16 %v761, %v761
        %v794 = vpack.c.bf16 %v762, %v762
        %v795 = vpack.c.bf16 %v763, %v763
        %v796 = vpack.c.bf16 %v764, %v764
        %v797 = vpack.c.bf16 %v765, %v765
        %v798 = vpack.c.bf16 %v766, %v766
        %v799 = vpack.c.bf16 %v767, %v767
        %v800 = vpack.c.bf16 %v768, %v768
        %v801 = vpack.c.bf16 %v769, %v769
        %v802 = vpack.c.bf16 %v770, %v770
        %v803 = vpack.c.bf16 %v771, %v771
        %v804 = vpack.c.bf16 %v772, %v772
        %v805 = vpack.c.bf16 %v773, %v773
        %v806 = vpack.c.bf16 %v774, %v774
        %v807 = vpack.c.bf16 %v775, %v775
        %v808 = vpack.c.bf16 %v776, %v776
        %v809 = vpack.c.bf16 %v777, %v777
        %v810 = vpack.c.bf16 %v778, %v778
        %v811 = vpack.c.bf16 %v779, %v779
        %v812 = vpack.c.bf16 %v780, %v780
        %v813 = vpack.c.bf16 %v781, %v781
        %v814 = vpack.c.bf16 %v782, %v782
        %v815 = vpack.c.bf16 %v783, %v783
        %v816 = vpack.c.bf16 %v784, %v784
        %v817 = vpack.c.bf16 %v785, %v785
        %v818 = vld [vmem:[%s5] sm:$0xff]
        %v819 = vld [vmem:[%s5 + $0x8] sm:$0xff]
        %v820 = vld [vmem:[%s5 + $0x10] sm:$0xff]
        %v821 = vld [vmem:[%s5 + $0x18] sm:$0xff]
        %v822 = vld [vmem:[%s5 + $0x20] sm:$0xff]
        %v823 = vld [vmem:[%s5 + $0x28] sm:$0xff]
        %v824 = vld [vmem:[%s5 + $0x30] sm:$0xff]
        %v825 = vld [vmem:[%s5 + $0x38] sm:$0xff]
        %v826 = vld [vmem:[%s5 + $0x40] sm:$0xff]
        %v827 = vld [vmem:[%s5 + $0x48] sm:$0xff]
        %v828 = vld [vmem:[%s5 + $0x50] sm:$0xff]
        %v829 = vld [vmem:[%s5 + $0x58] sm:$0xff]
        %v830 = vld [vmem:[%s5 + $0x60] sm:$0xff]
        %v831 = vld [vmem:[%s5 + $0x68] sm:$0xff]
        %v832 = vld [vmem:[%s5 + $0x70] sm:$0xff]
        %v833 = vld [vmem:[%s5 + $0x78] sm:$0xff]
        %v850 = vunpack.c.l.b16 %v818
        %v851 = vunpack.c.h.b16 %v818
        %v852 = vunpack.c.l.b16 %v819
        %v853 = vunpack.c.h.b16 %v819
        %v854 = vunpack.c.l.b16 %v820
        %v855 = vunpack.c.h.b16 %v820
        %v856 = vunpack.c.l.b16 %v821
        %v857 = vunpack.c.h.b16 %v821
        %v858 = vunpack.c.l.b16 %v822
        %v859 = vunpack.c.h.b16 %v822
        %v860 = vunpack.c.l.b16 %v823
        %v861 = vunpack.c.h.b16 %v823
        %v862 = vunpack.c.l.b16 %v824
        %v863 = vunpack.c.h.b16 %v824
        %v864 = vunpack.c.l.b16 %v825
        %v865 = vunpack.c.h.b16 %v825
        %v866 = vunpack.c.l.b16 %v826
        %v867 = vunpack.c.h.b16 %v826
        %v868 = vunpack.c.l.b16 %v827
        %v869 = vunpack.c.h.b16 %v827
        %v870 = vunpack.c.l.b16 %v828
        %v871 = vunpack.c.h.b16 %v828
        %v872 = vunpack.c.l.b16 %v829
        %v873 = vunpack.c.h.b16 %v829
        %v874 = vunpack.c.l.b16 %v830
        %v875 = vunpack.c.h.b16 %v830
        %v876 = vunpack.c.l.b16 %v831
        %v877 = vunpack.c.h.b16 %v831
        %v878 = vunpack.c.l.b16 %v832
        %v879 = vunpack.c.h.b16 %v832
        %v880 = vunpack.c.l.b16 %v833
        %v881 = vunpack.c.h.b16 %v833
        %v882 = vpack.c.b16 %v850, %v850
        %v883 = vpack.c.b16 %v851, %v851
        %v884 = vpack.c.b16 %v852, %v852
        %v885 = vpack.c.b16 %v853, %v853
        %v886 = vpack.c.b16 %v854, %v854
        %v887 = vpack.c.b16 %v855, %v855
        %v888 = vpack.c.b16 %v856, %v856
        %v889 = vpack.c.b16 %v857, %v857
        %v890 = vpack.c.b16 %v858, %v858
        %v891 = vpack.c.b16 %v859, %v859
        %v892 = vpack.c.b16 %v860, %v860
        %v893 = vpack.c.b16 %v861, %v861
        %v894 = vpack.c.b16 %v862, %v862
        %v895 = vpack.c.b16 %v863, %v863
        %v896 = vpack.c.b16 %v864, %v864
        %v897 = vpack.c.b16 %v865, %v865
        %v898 = vpack.c.b16 %v866, %v866
        %v899 = vpack.c.b16 %v867, %v867
        %v900 = vpack.c.b16 %v868, %v868
        %v901 = vpack.c.b16 %v869, %v869
        %v902 = vpack.c.b16 %v870, %v870
        %v903 = vpack.c.b16 %v871, %v871
        %v904 = vpack.c.b16 %v872, %v872
        %v905 = vpack.c.b16 %v873, %v873
        %v906 = vpack.c.b16 %v874, %v874
        %v907 = vpack.c.b16 %v875, %v875
        %v908 = vpack.c.b16 %v876, %v876
        %v909 = vpack.c.b16 %v877, %v877
        %v910 = vpack.c.b16 %v878, %v878
        %v911 = vpack.c.b16 %v879, %v879
        %v912 = vpack.c.b16 %v880, %v880
        %v913 = vpack.c.b16 %v881, %v881
        %946 = vmatpush.bf16.xpose.msra.mxu0 0
        %947 = vmatpush.bf16.xpose.msra.mxu0 0
        %948 = vmatpush.bf16.xpose.msra.mxu0 0
        %949 = vmatpush.bf16.xpose.msra.mxu0 0
        %950 = vmatpush.bf16.xpose.msra.mxu0 0
        %951 = vmatpush.bf16.xpose.msra.mxu0 0
        %952 = vmatpush.bf16.xpose.msra.mxu0 0
        %953 = vmatpush.bf16.xpose.msra.mxu0 %v882
        %954 = vmatmul.bf16.gmra.mxu0 %v786
        %v955 = vpop.f32.mrf.mxu0
        %v956 = vadd.f32 0.0, %v955
        %v957 = vpop.f32.mrf.mxu0
        %958 = vdwg.mxu0
        %959 = vmatpush.bf16.xpose.msra.mxu0 0
        %960 = vmatpush.bf16.xpose.msra.mxu0 0
        %961 = vmatpush.bf16.xpose.msra.mxu0 0
        %962 = vmatpush.bf16.xpose.msra.mxu0 0
        %963 = vmatpush.bf16.xpose.msra.mxu0 0
        %964 = vmatpush.bf16.xpose.msra.mxu0 0
        %965 = vmatpush.bf16.xpose.msra.mxu0 0
        %966 = vmatpush.bf16.xpose.msra.mxu0 %v883
        %967 = vmatmul.bf16.gmra.mxu0 %v787
        %v968 = vpop.f32.mrf.mxu0
        %v969 = vadd.f32 %v956, %v968
        %v970 = vpop.f32.mrf.mxu0
        %971 = vdwg.mxu0
        %972 = vmatpush.bf16.xpose.msra.mxu0 0
        %973 = vmatpush.bf16.xpose.msra.mxu0 0
        %974 = vmatpush.bf16.xpose.msra.mxu0 0
        %975 = vmatpush.bf16.xpose.msra.mxu0 0
        %976 = vmatpush.bf16.xpose.msra.mxu0 0
        %977 = vmatpush.bf16.xpose.msra.mxu0 0
        %978 = vmatpush.bf16.xpose.msra.mxu0 0
        %979 = vmatpush.bf16.xpose.msra.mxu0 %v884
        %980 = vmatmul.bf16.gmra.mxu0 %v788
        %v981 = vpop.f32.mrf.mxu0
        %v982 = vadd.f32 %v969, %v981
        %v983 = vpop.f32.mrf.mxu0
        %984 = vdwg.mxu0
        %985 = vmatpush.bf16.xpose.msra.mxu0 0
        %986 = vmatpush.bf16.xpose.msra.mxu0 0
        %987 = vmatpush.bf16.xpose.msra.mxu0 0
        %988 = vmatpush.bf16.xpose.msra.mxu0 0
        %989 = vmatpush.bf16.xpose.msra.mxu0 0
        %990 = vmatpush.bf16.xpose.msra.mxu0 0
        %991 = vmatpush.bf16.xpose.msra.mxu0 0
        %992 = vmatpush.bf16.xpose.msra.mxu0 %v885
        %993 = vmatmul.bf16.gmra.mxu0 %v789
        %v994 = vpop.f32.mrf.mxu0
        %v995 = vadd.f32 %v982, %v994
        %v996 = vpop.f32.mrf.mxu0
        %997 = vdwg.mxu0
        %998 = vmatpush.bf16.xpose.msra.mxu0 0
        %999 = vmatpush.bf16.xpose.msra.mxu0 0
        %1000 = vmatpush.bf16.xpose.msra.mxu0 0
        %1001 = vmatpush.bf16.xpose.msra.mxu0 0
        %1002 = vmatpush.bf16.xpose.msra.mxu0 0
        %1003 = vmatpush.bf16.xpose.msra.mxu0 0
        %1004 = vmatpush.bf16.xpose.msra.mxu0 0
        %1005 = vmatpush.bf16.xpose.msra.mxu0 %v886
        %1006 = vmatmul.bf16.gmra.mxu0 %v790
        %v1007 = vpop.f32.mrf.mxu0
        %v1008 = vadd.f32 %v995, %v1007
        %v1009 = vpop.f32.mrf.mxu0
        %1010 = vdwg.mxu0
        %1011 = vmatpush.bf16.xpose.msra.mxu0 0
        %1012 = vmatpush.bf16.xpose.msra.mxu0 0
        %1013 = vmatpush.bf16.xpose.msra.mxu0 0
        %1014 = vmatpush.bf16.xpose.msra.mxu0 0
        %1015 = vmatpush.bf16.xpose.msra.mxu0 0
        %1016 = vmatpush.bf16.xpose.msra.mxu0 0
        %1017 = vmatpush.bf16.xpose.msra.mxu0 0
        %1018 = vmatpush.bf16.xpose.msra.mxu0 %v887
        %1019 = vmatmul.bf16.gmra.mxu0 %v791
        %v1020 = vpop.f32.mrf.mxu0
        %v1021 = vadd.f32 %v1008, %v1020
        %v1022 = vpop.f32.mrf.mxu0
        %1023 = vdwg.mxu0
        %1024 = vmatpush.bf16.xpose.msra.mxu0 0
        %1025 = vmatpush.bf16.xpose.msra.mxu0 0
        %1026 = vmatpush.bf16.xpose.msra.mxu0 0
        %1027 = vmatpush.bf16.xpose.msra.mxu0 0
        %1028 = vmatpush.bf16.xpose.msra.mxu0 0
        %1029 = vmatpush.bf16.xpose.msra.mxu0 0
        %1030 = vmatpush.bf16.xpose.msra.mxu0 0
        %1031 = vmatpush.bf16.xpose.msra.mxu0 %v888
        %1032 = vmatmul.bf16.gmra.mxu0 %v792
        %v1033 = vpop.f32.mrf.mxu0
        %v1034 = vadd.f32 %v1021, %v1033
        %v1035 = vpop.f32.mrf.mxu0
        %1036 = vdwg.mxu0
        %1037 = vmatpush.bf16.xpose.msra.mxu0 0
        %1038 = vmatpush.bf16.xpose.msra.mxu0 0
        %1039 = vmatpush.bf16.xpose.msra.mxu0 0
        %1040 = vmatpush.bf16.xpose.msra.mxu0 0
        %1041 = vmatpush.bf16.xpose.msra.mxu0 0
        %1042 = vmatpush.bf16.xpose.msra.mxu0 0
        %1043 = vmatpush.bf16.xpose.msra.mxu0 0
        %1044 = vmatpush.bf16.xpose.msra.mxu0 %v889
        %1045 = vmatmul.bf16.gmra.mxu0 %v793
        %v1046 = vpop.f32.mrf.mxu0
        %v1047 = vadd.f32 %v1034, %v1046
        %v1048 = vpop.f32.mrf.mxu0
        %1049 = vdwg.mxu0
        %1050 = vmatpush.bf16.xpose.msra.mxu0 0
        %1051 = vmatpush.bf16.xpose.msra.mxu0 0
        %1052 = vmatpush.bf16.xpose.msra.mxu0 0
        %1053 = vmatpush.bf16.xpose.msra.mxu0 0
        %1054 = vmatpush.bf16.xpose.msra.mxu0 0
        %1055 = vmatpush.bf16.xpose.msra.mxu0 0
        %1056 = vmatpush.bf16.xpose.msra.mxu0 0
        %1057 = vmatpush.bf16.xpose.msra.mxu0 %v890
        %1058 = vmatmul.bf16.gmra.mxu0 %v794
        %v1059 = vpop.f32.mrf.mxu0
        %v1060 = vadd.f32 %v1047, %v1059
        %v1061 = vpop.f32.mrf.mxu0
        %1062 = vdwg.mxu0
        %1063 = vmatpush.bf16.xpose.msra.mxu0 0
        %1064 = vmatpush.bf16.xpose.msra.mxu0 0
        %1065 = vmatpush.bf16.xpose.msra.mxu0 0
        %1066 = vmatpush.bf16.xpose.msra.mxu0 0
        %1067 = vmatpush.bf16.xpose.msra.mxu0 0
        %1068 = vmatpush.bf16.xpose.msra.mxu0 0
        %1069 = vmatpush.bf16.xpose.msra.mxu0 0
        %1070 = vmatpush.bf16.xpose.msra.mxu0 %v891
        %1071 = vmatmul.bf16.gmra.mxu0 %v795
        %v1072 = vpop.f32.mrf.mxu0
        %v1073 = vadd.f32 %v1060, %v1072
        %v1074 = vpop.f32.mrf.mxu0
        %1075 = vdwg.mxu0
        %1076 = vmatpush.bf16.xpose.msra.mxu0 0
        %1077 = vmatpush.bf16.xpose.msra.mxu0 0
        %1078 = vmatpush.bf16.xpose.msra.mxu0 0
        %1079 = vmatpush.bf16.xpose.msra.mxu0 0
        %1080 = vmatpush.bf16.xpose.msra.mxu0 0
        %1081 = vmatpush.bf16.xpose.msra.mxu0 0
        %1082 = vmatpush.bf16.xpose.msra.mxu0 0
        %1083 = vmatpush.bf16.xpose.msra.mxu0 %v892
        %1084 = vmatmul.bf16.gmra.mxu0 %v796
        %v1085 = vpop.f32.mrf.mxu0
        %v1086 = vadd.f32 %v1073, %v1085
        %v1087 = vpop.f32.mrf.mxu0
        %1088 = vdwg.mxu0
        %1089 = vmatpush.bf16.xpose.msra.mxu0 0
        %1090 = vmatpush.bf16.xpose.msra.mxu0 0
        %1091 = vmatpush.bf16.xpose.msra.mxu0 0
        %1092 = vmatpush.bf16.xpose.msra.mxu0 0
        %1093 = vmatpush.bf16.xpose.msra.mxu0 0
        %1094 = vmatpush.bf16.xpose.msra.mxu0 0
        %1095 = vmatpush.bf16.xpose.msra.mxu0 0
        %1096 = vmatpush.bf16.xpose.msra.mxu0 %v893
        %1097 = vmatmul.bf16.gmra.mxu0 %v797
        %v1098 = vpop.f32.mrf.mxu0
        %v1099 = vadd.f32 %v1086, %v1098
        %v1100 = vpop.f32.mrf.mxu0
        %1101 = vdwg.mxu0
        %1102 = vmatpush.bf16.xpose.msra.mxu0 0
        %1103 = vmatpush.bf16.xpose.msra.mxu0 0
        %1104 = vmatpush.bf16.xpose.msra.mxu0 0
        %1105 = vmatpush.bf16.xpose.msra.mxu0 0
        %1106 = vmatpush.bf16.xpose.msra.mxu0 0
        %1107 = vmatpush.bf16.xpose.msra.mxu0 0
        %1108 = vmatpush.bf16.xpose.msra.mxu0 0
        %1109 = vmatpush.bf16.xpose.msra.mxu0 %v894
        %1110 = vmatmul.bf16.gmra.mxu0 %v798
        %v1111 = vpop.f32.mrf.mxu0
        %v1112 = vadd.f32 %v1099, %v1111
        %v1113 = vpop.f32.mrf.mxu0
        %1114 = vdwg.mxu0
        %1115 = vmatpush.bf16.xpose.msra.mxu0 0
        %1116 = vmatpush.bf16.xpose.msra.mxu0 0
        %1117 = vmatpush.bf16.xpose.msra.mxu0 0
        %1118 = vmatpush.bf16.xpose.msra.mxu0 0
        %1119 = vmatpush.bf16.xpose.msra.mxu0 0
        %1120 = vmatpush.bf16.xpose.msra.mxu0 0
        %1121 = vmatpush.bf16.xpose.msra.mxu0 0
        %1122 = vmatpush.bf16.xpose.msra.mxu0 %v895
        %1123 = vmatmul.bf16.gmra.mxu0 %v799
        %v1124 = vpop.f32.mrf.mxu0
        %v1125 = vadd.f32 %v1112, %v1124
        %v1126 = vpop.f32.mrf.mxu0
        %1127 = vdwg.mxu0
        %1128 = vmatpush.bf16.xpose.msra.mxu0 0
        %1129 = vmatpush.bf16.xpose.msra.mxu0 0
        %1130 = vmatpush.bf16.xpose.msra.mxu0 0
        %1131 = vmatpush.bf16.xpose.msra.mxu0 0
        %1132 = vmatpush.bf16.xpose.msra.mxu0 0
        %1133 = vmatpush.bf16.xpose.msra.mxu0 0
        %1134 = vmatpush.bf16.xpose.msra.mxu0 0
        %1135 = vmatpush.bf16.xpose.msra.mxu0 %v896
        %1136 = vmatmul.bf16.gmra.mxu0 %v800
        %v1137 = vpop.f32.mrf.mxu0
        %v1138 = vadd.f32 %v1125, %v1137
        %v1139 = vpop.f32.mrf.mxu0
        %1140 = vdwg.mxu0
        %1141 = vmatpush.bf16.xpose.msra.mxu0 0
        %1142 = vmatpush.bf16.xpose.msra.mxu0 0
        %1143 = vmatpush.bf16.xpose.msra.mxu0 0
        %1144 = vmatpush.bf16.xpose.msra.mxu0 0
        %1145 = vmatpush.bf16.xpose.msra.mxu0 0
        %1146 = vmatpush.bf16.xpose.msra.mxu0 0
        %1147 = vmatpush.bf16.xpose.msra.mxu0 0
        %1148 = vmatpush.bf16.xpose.msra.mxu0 %v897
        %1149 = vmatmul.bf16.gmra.mxu0 %v801
        %v1150 = vpop.f32.mrf.mxu0
        %v1151 = vadd.f32 %v1138, %v1150
        %v1152 = vpop.f32.mrf.mxu0
        %1153 = vdwg.mxu0
        %1154 = vmatpush.bf16.xpose.msra.mxu0 0
        %1155 = vmatpush.bf16.xpose.msra.mxu0 0
        %1156 = vmatpush.bf16.xpose.msra.mxu0 0
        %1157 = vmatpush.bf16.xpose.msra.mxu0 0
        %1158 = vmatpush.bf16.xpose.msra.mxu0 0
        %1159 = vmatpush.bf16.xpose.msra.mxu0 0
        %1160 = vmatpush.bf16.xpose.msra.mxu0 0
        %1161 = vmatpush.bf16.xpose.msra.mxu0 %v898
        %1162 = vmatmul.bf16.gmra.mxu0 %v802
        %v1163 = vpop.f32.mrf.mxu0
        %v1164 = vadd.f32 %v1151, %v1163
        %v1165 = vpop.f32.mrf.mxu0
        %1166 = vdwg.mxu0
        %1167 = vmatpush.bf16.xpose.msra.mxu0 0
        %1168 = vmatpush.bf16.xpose.msra.mxu0 0
        %1169 = vmatpush.bf16.xpose.msra.mxu0 0
        %1170 = vmatpush.bf16.xpose.msra.mxu0 0
        %1171 = vmatpush.bf16.xpose.msra.mxu0 0
        %1172 = vmatpush.bf16.xpose.msra.mxu0 0
        %1173 = vmatpush.bf16.xpose.msra.mxu0 0
        %1174 = vmatpush.bf16.xpose.msra.mxu0 %v899
        %1175 = vmatmul.bf16.gmra.mxu0 %v803
        %v1176 = vpop.f32.mrf.mxu0
        %v1177 = vadd.f32 %v1164, %v1176
        %v1178 = vpop.f32.mrf.mxu0
        %1179 = vdwg.mxu0
        %1180 = vmatpush.bf16.xpose.msra.mxu0 0
        %1181 = vmatpush.bf16.xpose.msra.mxu0 0
        %1182 = vmatpush.bf16.xpose.msra.mxu0 0
        %1183 = vmatpush.bf16.xpose.msra.mxu0 0
        %1184 = vmatpush.bf16.xpose.msra.mxu0 0
        %1185 = vmatpush.bf16.xpose.msra.mxu0 0
        %1186 = vmatpush.bf16.xpose.msra.mxu0 0
        %1187 = vmatpush.bf16.xpose.msra.mxu0 %v900
        %1188 = vmatmul.bf16.gmra.mxu0 %v804
        %v1189 = vpop.f32.mrf.mxu0
        %v1190 = vadd.f32 %v1177, %v1189
        %v1191 = vpop.f32.mrf.mxu0
        %1192 = vdwg.mxu0
        %1193 = vmatpush.bf16.xpose.msra.mxu0 0
        %1194 = vmatpush.bf16.xpose.msra.mxu0 0
        %1195 = vmatpush.bf16.xpose.msra.mxu0 0
        %1196 = vmatpush.bf16.xpose.msra.mxu0 0
        %1197 = vmatpush.bf16.xpose.msra.mxu0 0
        %1198 = vmatpush.bf16.xpose.msra.mxu0 0
        %1199 = vmatpush.bf16.xpose.msra.mxu0 0
        %1200 = vmatpush.bf16.xpose.msra.mxu0 %v901
        %1201 = vmatmul.bf16.gmra.mxu0 %v805
        %v1202 = vpop.f32.mrf.mxu0
        %v1203 = vadd.f32 %v1190, %v1202
        %v1204 = vpop.f32.mrf.mxu0
        %1205 = vdwg.mxu0
        %1206 = vmatpush.bf16.xpose.msra.mxu0 0
        %1207 = vmatpush.bf16.xpose.msra.mxu0 0
        %1208 = vmatpush.bf16.xpose.msra.mxu0 0
        %1209 = vmatpush.bf16.xpose.msra.mxu0 0
        %1210 = vmatpush.bf16.xpose.msra.mxu0 0
        %1211 = vmatpush.bf16.xpose.msra.mxu0 0
        %1212 = vmatpush.bf16.xpose.msra.mxu0 0
        %1213 = vmatpush.bf16.xpose.msra.mxu0 %v902
        %1214 = vmatmul.bf16.gmra.mxu0 %v806
        %v1215 = vpop.f32.mrf.mxu0
        %v1216 = vadd.f32 %v1203, %v1215
        %v1217 = vpop.f32.mrf.mxu0
        %1218 = vdwg.mxu0
        %1219 = vmatpush.bf16.xpose.msra.mxu0 0
        %1220 = vmatpush.bf16.xpose.msra.mxu0 0
        %1221 = vmatpush.bf16.xpose.msra.mxu0 0
        %1222 = vmatpush.bf16.xpose.msra.mxu0 0
        %1223 = vmatpush.bf16.xpose.msra.mxu0 0
        %1224 = vmatpush.bf16.xpose.msra.mxu0 0
        %1225 = vmatpush.bf16.xpose.msra.mxu0 0
        %1226 = vmatpush.bf16.xpose.msra.mxu0 %v903
        %1227 = vmatmul.bf16.gmra.mxu0 %v807
        %v1228 = vpop.f32.mrf.mxu0
        %v1229 = vadd.f32 %v1216, %v1228
        %v1230 = vpop.f32.mrf.mxu0
        %1231 = vdwg.mxu0
        %1232 = vmatpush.bf16.xpose.msra.mxu0 0
        %1233 = vmatpush.bf16.xpose.msra.mxu0 0
        %1234 = vmatpush.bf16.xpose.msra.mxu0 0
        %1235 = vmatpush.bf16.xpose.msra.mxu0 0
        %1236 = vmatpush.bf16.xpose.msra.mxu0 0
        %1237 = vmatpush.bf16.xpose.msra.mxu0 0
        %1238 = vmatpush.bf16.xpose.msra.mxu0 0
        %1239 = vmatpush.bf16.xpose.msra.mxu0 %v904
        %1240 = vmatmul.bf16.gmra.mxu0 %v808
        %v1241 = vpop.f32.mrf.mxu0
        %v1242 = vadd.f32 %v1229, %v1241
        %v1243 = vpop.f32.mrf.mxu0
        %1244 = vdwg.mxu0
        %1245 = vmatpush.bf16.xpose.msra.mxu0 0
        %1246 = vmatpush.bf16.xpose.msra.mxu0 0
        %1247 = vmatpush.bf16.xpose.msra.mxu0 0
        %1248 = vmatpush.bf16.xpose.msra.mxu0 0
        %1249 = vmatpush.bf16.xpose.msra.mxu0 0
        %1250 = vmatpush.bf16.xpose.msra.mxu0 0
        %1251 = vmatpush.bf16.xpose.msra.mxu0 0
        %1252 = vmatpush.bf16.xpose.msra.mxu0 %v905
        %1253 = vmatmul.bf16.gmra.mxu0 %v809
        %v1254 = vpop.f32.mrf.mxu0
        %v1255 = vadd.f32 %v1242, %v1254
        %v1256 = vpop.f32.mrf.mxu0
        %1257 = vdwg.mxu0
        %1258 = vmatpush.bf16.xpose.msra.mxu0 0
        %1259 = vmatpush.bf16.xpose.msra.mxu0 0
        %1260 = vmatpush.bf16.xpose.msra.mxu0 0
        %1261 = vmatpush.bf16.xpose.msra.mxu0 0
        %1262 = vmatpush.bf16.xpose.msra.mxu0 0
        %1263 = vmatpush.bf16.xpose.msra.mxu0 0
        %1264 = vmatpush.bf16.xpose.msra.mxu0 0
        %1265 = vmatpush.bf16.xpose.msra.mxu0 %v906
        %1266 = vmatmul.bf16.gmra.mxu0 %v810
        %v1267 = vpop.f32.mrf.mxu0
        %v1268 = vadd.f32 %v1255, %v1267
        %v1269 = vpop.f32.mrf.mxu0
        %1270 = vdwg.mxu0
        %1271 = vmatpush.bf16.xpose.msra.mxu0 0
        %1272 = vmatpush.bf16.xpose.msra.mxu0 0
        %1273 = vmatpush.bf16.xpose.msra.mxu0 0
        %1274 = vmatpush.bf16.xpose.msra.mxu0 0
        %1275 = vmatpush.bf16.xpose.msra.mxu0 0
        %1276 = vmatpush.bf16.xpose.msra.mxu0 0
        %1277 = vmatpush.bf16.xpose.msra.mxu0 0
        %1278 = vmatpush.bf16.xpose.msra.mxu0 %v907
        %1279 = vmatmul.bf16.gmra.mxu0 %v811
        %v1280 = vpop.f32.mrf.mxu0
        %v1281 = vadd.f32 %v1268, %v1280
        %v1282 = vpop.f32.mrf.mxu0
        %1283 = vdwg.mxu0
        %1284 = vmatpush.bf16.xpose.msra.mxu0 0
        %1285 = vmatpush.bf16.xpose.msra.mxu0 0
        %1286 = vmatpush.bf16.xpose.msra.mxu0 0
        %1287 = vmatpush.bf16.xpose.msra.mxu0 0
        %1288 = vmatpush.bf16.xpose.msra.mxu0 0
        %1289 = vmatpush.bf16.xpose.msra.mxu0 0
        %1290 = vmatpush.bf16.xpose.msra.mxu0 0
        %1291 = vmatpush.bf16.xpose.msra.mxu0 %v908
        %1292 = vmatmul.bf16.gmra.mxu0 %v812
        %v1293 = vpop.f32.mrf.mxu0
        %v1294 = vadd.f32 %v1281, %v1293
        %v1295 = vpop.f32.mrf.mxu0
        %1296 = vdwg.mxu0
        %1297 = vmatpush.bf16.xpose.msra.mxu0 0
        %1298 = vmatpush.bf16.xpose.msra.mxu0 0
        %1299 = vmatpush.bf16.xpose.msra.mxu0 0
        %1300 = vmatpush.bf16.xpose.msra.mxu0 0
        %1301 = vmatpush.bf16.xpose.msra.mxu0 0
        %1302 = vmatpush.bf16.xpose.msra.mxu0 0
        %1303 = vmatpush.bf16.xpose.msra.mxu0 0
        %1304 = vmatpush.bf16.xpose.msra.mxu0 %v909
        %1305 = vmatmul.bf16.gmra.mxu0 %v813
        %v1306 = vpop.f32.mrf.mxu0
        %v1307 = vadd.f32 %v1294, %v1306
        %v1308 = vpop.f32.mrf.mxu0
        %1309 = vdwg.mxu0
        %1310 = vmatpush.bf16.xpose.msra.mxu0 0
        %1311 = vmatpush.bf16.xpose.msra.mxu0 0
        %1312 = vmatpush.bf16.xpose.msra.mxu0 0
        %1313 = vmatpush.bf16.xpose.msra.mxu0 0
        %1314 = vmatpush.bf16.xpose.msra.mxu0 0
        %1315 = vmatpush.bf16.xpose.msra.mxu0 0
        %1316 = vmatpush.bf16.xpose.msra.mxu0 0
        %1317 = vmatpush.bf16.xpose.msra.mxu0 %v910
        %1318 = vmatmul.bf16.gmra.mxu0 %v814
        %v1319 = vpop.f32.mrf.mxu0
        %v1320 = vadd.f32 %v1307, %v1319
        %v1321 = vpop.f32.mrf.mxu0
        %1322 = vdwg.mxu0
        %1323 = vmatpush.bf16.xpose.msra.mxu0 0
        %1324 = vmatpush.bf16.xpose.msra.mxu0 0
        %1325 = vmatpush.bf16.xpose.msra.mxu0 0
        %1326 = vmatpush.bf16.xpose.msra.mxu0 0
        %1327 = vmatpush.bf16.xpose.msra.mxu0 0
        %1328 = vmatpush.bf16.xpose.msra.mxu0 0
        %1329 = vmatpush.bf16.xpose.msra.mxu0 0
        %1330 = vmatpush.bf16.xpose.msra.mxu0 %v911
        %1331 = vmatmul.bf16.gmra.mxu0 %v815
        %v1332 = vpop.f32.mrf.mxu0
        %v1333 = vadd.f32 %v1320, %v1332
        %v1334 = vpop.f32.mrf.mxu0
        %1335 = vdwg.mxu0
        %1336 = vmatpush.bf16.xpose.msra.mxu0 0
        %1337 = vmatpush.bf16.xpose.msra.mxu0 0
        %1338 = vmatpush.bf16.xpose.msra.mxu0 0
        %1339 = vmatpush.bf16.xpose.msra.mxu0 0
        %1340 = vmatpush.bf16.xpose.msra.mxu0 0
        %1341 = vmatpush.bf16.xpose.msra.mxu0 0
        %1342 = vmatpush.bf16.xpose.msra.mxu0 0
        %1343 = vmatpush.bf16.xpose.msra.mxu0 %v912
        %1344 = vmatmul.bf16.gmra.mxu0 %v816
        %v1345 = vpop.f32.mrf.mxu0
        %v1346 = vadd.f32 %v1333, %v1345
        %v1347 = vpop.f32.mrf.mxu0
        %1348 = vdwg.mxu0
        %1349 = vmatpush.bf16.xpose.msra.mxu0 0
        %1350 = vmatpush.bf16.xpose.msra.mxu0 0
        %1351 = vmatpush.bf16.xpose.msra.mxu0 0
        %1352 = vmatpush.bf16.xpose.msra.mxu0 0
        %1353 = vmatpush.bf16.xpose.msra.mxu0 0
        %1354 = vmatpush.bf16.xpose.msra.mxu0 0
        %1355 = vmatpush.bf16.xpose.msra.mxu0 0
        %1356 = vmatpush.bf16.xpose.msra.mxu0 %v913
        %1357 = vmatmul.bf16.gmra.mxu0 %v817
        %v1358 = vpop.f32.mrf.mxu0
        %v1359 = vadd.f32 %v1346, %v1358
        %v1360 = vpop.f32.mrf.mxu0
        %1361 = vdwg.mxu0
        %v1362 = vld [vmem:[%s6] sm:$0x1]
        %v1363 = vadd.f32 %v1359, %v1362
        %vm1364 = vcmask 32768
        %1365 = vst.msk [vmem:[%s297] sm:$0x1] %vm1364, %v1363
        %s1366 = sand.u32 %s203, 1
        %s1367 = scalar_lea.sflag [#allocation5], %s1366
        %s1368 = sand.u32 %s203, 1
        %s1369 = scalar_lea.vmem [#allocation4], %s1368
        // Predicated region
        $region53: #{forward.1} parent=51 // pred_check
          %p1370 = pneg %p213
        $region54: #{forward.1} parent=51 // pred_check_branch
          %1372 = sbr.rel (%p1370) target = $region56
        $region55: #{forward.1} parent=51 // pred_region
          %1374 = vsyncadd %s1367, 0
          %s1375 = scalar_lea.hbm %s8, %s22
          %s1377 = sshll.u32 %s1369, 4
          %s1378 = int_to_ptr.vmem [resolvable:$true] %s1377
          %s1379 = sshll.u32 %s1375, 4
          %s1380 = int_to_ptr.hbm [resolvable:$true] %s1379
          %1382 = dma.vmem_to_hbm [thread:$0]  %s1378, 16, %s1380, %s1367
        $region56: #{forward.1} parent=51 // pred_fallthru
          _
      $region52: #{forward.1} parent=5 // pred_fallthru
        _
      %p1383 = scmp.le.s32.totalorder 2, %s17
      // Predicated region
      $region57: #{forward.1} parent=5 // pred_check
        %p1384 = pneg %p1383
      $region58: #{forward.1} parent=5 // pred_check_branch
        %1386 = sbr.rel (%p1384) target = $region60
      $region59: #{forward.1} parent=5 // pred_region
        %s1387 = ssub.s32 %s17, 2
        // Predicated region
        $region61: #{forward.1} parent=59 // pred_check
          %p1388 = pneg %p219
        $region62: #{forward.1} parent=59 // pred_check_branch
          %1390 = sbr.rel (%p1388) target = $region64
        $region63: #{forward.1} parent=59 // pred_region
          %s1391 = sand.u32 %s204, 1
          %s1392 = scalar_lea.sflag [#allocation5], %s1391
          %s1393 = sand.u32 %s204, 1
          %s1394 = scalar_lea.vmem [#allocation4], %s1393
          %1396 = dma.done %s1392, 16
        $region64: #{forward.1} parent=59 // pred_fallthru
          _
      $region60: #{forward.1} parent=5 // pred_fallthru
        _
    $region6: #{forward.1} parent=1 // loop_footer
      %s21 = sadd.s32 1, %s17
    $region7: #{forward.1} parent=1 // loop_footer_branch
      %16 = sbr.rel target = $region3
    $region8: #{forward.1} parent=1 // loop_exit
      _
    %1397 = vsyncpa [#allocation5], 1
    %s1398 = scalar_lea.sflag [#allocation5], 1
    %1399 = vsyncpa %s1398, 1

</llo_original>
